<compile_context>
chip_gen: v5e
topology: v5e:2x2
jax: 0.10.0
libtpu: 0.0.40
codegen_flags: <defaults>
</compile_context>

<pallas_src>
import functools

import jax
import jax.numpy as jnp
from jax import lax
from jax.experimental import pallas as pl
from jax.experimental.pallas import tpu as pltpu

# dot_general dimension numbers for A @ B^T (contract last dim of both).
_NT_DIMS = (((1,), (1,)), ((), ()))


# ----------------------------------------------------------------------------
# Fused Pallas kernel: expand 1x1 -> depthwise 3x3 -> project 1x1 (+ residual)
# ----------------------------------------------------------------------------
def _fused_kernel(x_ref, xres_ref, w1_ref, b1_ref, wd_ref, b2_ref, w3t_ref,
                  b3_ref, o_ref, *, stride, tr, H, W, Wo, residual):
    """One (batch, row-tile) step of the fused LinearBottleNeck.

    x_ref   : (1, H+2, Wp, Cin)   zero-padded NHWC input (Wp % 8 == 0)
    xres_ref: (1, Cin, tr*W)      channel-major input rows (residual add only)
    w*_ref  : conv weights with the BN scale pre-folded (w3 pre-transposed)
    o_ref   : (1, Cout, tr*Wo)    lane-dense, channel-major output tile
    """
    Wp = x_ref.shape[2]
    Cin = x_ref.shape[3]
    Cexp = w1_ref.shape[1]
    n_in = (tr - 1) * stride + 3          # input rows needed (incl. 1-row halo)

    r = pl.program_id(1)
    row0 = r * (tr * stride)              # first padded input row of the window

    xw = x_ref[0, pl.ds(row0, n_in)]                       # (n_in, Wp, Cin)

    # ---- Stage 1: expand 1x1 conv (+BN) + ReLU6, one MXU matmul ------------
    xw2d = xw.reshape(n_in * Wp, Cin)                      # aligned shape-cast
    e2d = jnp.dot(xw2d, w1_ref[...], preferred_element_type=jnp.float32)
    e2d = jnp.clip(e2d + b1_ref[...], 0.0, 6.0)
    e = e2d.reshape(n_in, Wp, Cexp)

    # Spatial zero-padding must stay zero after bias + ReLU6: mask halo pixels
    # (padded row 0 / H+1, padded col 0 and cols >= W+1) back to zero.
    prow = row0 + lax.broadcasted_iota(jnp.int32, (n_in, 1, 1), 0)
    pcol = lax.broadcasted_iota(jnp.int32, (1, Wp, 1), 1)
    valid = (prow >= 1) & (prow <= H) & (pcol >= 1) & (pcol <= W)
    e = jnp.where(valid, e, 0.0)

    # ---- Stage 2: 3x3 depthwise conv (+BN) + ReLU6 (VPU) --------------------
    wd = wd_ref[...]                                       # (3, 3, Cexp)
    acc = jnp.zeros((tr, Wo, Cexp), jnp.float32)
    for kh in range(3):
        for kw in range(3):
            tap = e[kh:kh + (tr - 1) * stride + 1:stride,
                    kw:kw + (Wo - 1) * stride + 1:stride, :]  # (tr, Wo, Cexp)
            acc = acc + tap * wd[kh, kw, :]
    z = jnp.clip(acc + b2_ref[...], 0.0, 6.0)              # (tr, Wo, Cexp)

    # ---- Stage 3: project 1x1 (+BN) (+residual), ONE transposed MXU dot -----
    z2d = z.reshape(tr * Wo, Cexp)                         # aligned shape-cast
    y_t = lax.dot_general(w3t_ref[...], z2d, _NT_DIMS,
                          preferred_element_type=jnp.float32)  # (Cout, tr*Wo)
    y_t = y_t + b3_ref[...]
    if residual:
        # stride == 1 and Cin == Cout: add the original input pixels
        # (already channel-major and flattened identically).
        y_t = y_t + xres_ref[0]
    o_ref[0] = y_t.astype(o_ref.dtype)                     # lane-dense store


def _round_up(v, m):
    return (v + m - 1) // m * m


def _pick_row_tile(Ho, target=16):
    """Largest divisor of Ho that is <= target (keeps output blocks exact)."""
    best = 1
    for c in range(1, min(Ho, target) + 1):
        if Ho % c == 0:
            best = c
    return best


# ----------------------------------------------------------------------------
# Wrapper
# ----------------------------------------------------------------------------
def linear_bottleneck_forward(x_nchw, p, stride):
    """Full LinearBottleNeck forward.  Input / output are NCHW (PyTorch)."""
    N, Cin, H, W = x_nchw.shape
    Cexp = p["w1"].shape[1]
    Cout = p["w3"].shape[1]
    Ho = (H + 2 - 3) // stride + 1
    Wo = (W + 2 - 3) // stride + 1
    residual = (stride == 1 and Cin == Cout)

    # Fold BN scales into the conv weights (host-side, exact f32 algebra).
    w1s = p["w1"] * p["s1"][None, :]                       # (Cin, Cexp)
    wds = p["wd"] * p["s2"][None, None, :]                 # (3, 3, Cexp)
    w3t = (p["w3"] * p["s3"][None, :]).T                   # (Cout, Cexp)
    b1 = p["b1"].reshape(1, Cexp)
    b2 = p["b2"].reshape(1, Cexp)
    b3 = p["b3"].reshape(Cout, 1)

    # Pad only the small Cin-channel input; width rounded up to a multiple of 8
    # so in-kernel reshapes are sublane-aligned (extra cols are masked anyway).
    x_nhwc = jnp.transpose(x_nchw, (0, 2, 3, 1))
    Hp = H + 2
    Wp = _round_up(W + 2, 8)
    xp = jnp.pad(x_nhwc, ((0, 0), (1, 1), (1, Wp - W - 1), (0, 0)))

    # Channel-major flattened input for the lane-dense residual add.
    x_flat = x_nchw.reshape(N, Cin, H * W)

    tr = _pick_row_tile(Ho)                 # whole image in one tile here
    n_row_tiles = Ho // tr

    if residual:
        xres_spec = pl.BlockSpec((1, Cin, tr * W), lambda n, r: (n, 0, r))
    else:
        xres_spec = pl.BlockSpec((1, Cin, H * W), lambda n, r: (n, 0, 0))

    kernel = functools.partial(_fused_kernel, stride=stride, tr=tr,
                               H=H, W=W, Wo=Wo, residual=residual)

    out = pl.pallas_call(
        kernel,
        out_shape=jax.ShapeDtypeStruct((N, Cout, Ho * Wo), x_nchw.dtype),
        grid_spec=pltpu.PrefetchScalarGridSpec(
            num_scalar_prefetch=0,
            grid=(N, n_row_tiles),
            in_specs=[
                pl.BlockSpec((1, Hp, Wp, Cin), lambda n, r: (n, 0, 0, 0)),
                xres_spec,
                pl.BlockSpec((Cin, Cexp), lambda n, r: (0, 0)),
                pl.BlockSpec((1, Cexp), lambda n, r: (0, 0)),
                pl.BlockSpec((3, 3, Cexp), lambda n, r: (0, 0, 0)),
                pl.BlockSpec((1, Cexp), lambda n, r: (0, 0)),
                pl.BlockSpec((Cout, Cexp), lambda n, r: (0, 0)),
                pl.BlockSpec((Cout, 1), lambda n, r: (0, 0)),
            ],
            out_specs=pl.BlockSpec((1, Cout, tr * Wo), lambda n, r: (n, 0, r)),
        ),
        compiler_params=pltpu.CompilerParams(
            dimension_semantics=("parallel", "parallel")),
    )(xp, x_flat, w1s, b1, wds, b2, w3t, b3)

    return out.reshape(N, Cout, Ho, Wo)                    # already NCHW


# ----------------------------------------------------------------------------
# Deterministic parameter construction (BN folded with conv bias)
# ----------------------------------------------------------------------------
def _fold_bn(key, cout, conv_bias_scale=0.1, eps=1e-5):
    k1, k2, k3, k4, k5 = jax.random.split(key, 5)
    conv_b = conv_bias_scale * jax.random.normal(k1, (cout,), jnp.float32)
    gamma = jax.random.uniform(k2, (cout,), jnp.float32, 0.5, 1.5)
    beta = 0.1 * jax.random.normal(k3, (cout,), jnp.float32)
    mean = 0.1 * jax.random.normal(k4, (cout,), jnp.float32)
    var = jax.random.uniform(k5, (cout,), jnp.float32, 0.5, 1.5)
    scale = gamma / jnp.sqrt(var + eps)
    bias = beta + (conv_b - mean) * scale
    return scale, bias


def make_params(key, in_c, out_c, t):
    cexp = in_c * t
    keys = jax.random.split(key, 6)
    w1 = 0.1 * jax.random.normal(keys[0], (in_c, cexp), jnp.float32)
    s1, b1 = _fold_bn(keys[1], cexp)
    wd = 0.1 * jax.random.normal(keys[2], (3, 3, cexp), jnp.float32)
    s2, b2 = _fold_bn(keys[3], cexp)
    w3 = 0.1 * jax.random.normal(keys[4], (cexp, out_c), jnp.float32)
    s3, b3 = _fold_bn(keys[5], out_c)
    return dict(w1=w1, s1=s1, b1=b1, wd=wd, s2=s2, b2=b2, w3=w3, s3=s3, b3=b3)


# ----------------------------------------------------------------------------
# Pure-JAX reference (for correctness check)
# ----------------------------------------------------------------------------
def ref_forward(x_nchw, p, stride):
    x = jnp.transpose(x_nchw, (0, 2, 3, 1))
    N, H, W, Cin = x.shape
    y = jnp.einsum("nhwc,cd->nhwd", x, p["w1"]) * p["s1"] + p["b1"]
    y = jnp.clip(y, 0.0, 6.0)
    yp = jnp.pad(y, ((0, 0), (1, 1), (1, 1), (0, 0)))
    Ho = (H + 2 - 3) // stride + 1
    Wo = (W + 2 - 3) // stride + 1
    acc = jnp.zeros((N, Ho, Wo, y.shape[-1]), jnp.float32)
    for kh in range(3):
        for kw in range(3):
            acc = acc + yp[:, kh:kh + (Ho - 1) * stride + 1:stride,
                           kw:kw + (Wo - 1) * stride + 1:stride, :] * p["wd"][kh, kw]
    z = jnp.clip(acc * p["s2"] + p["b2"], 0.0, 6.0)
    o = jnp.einsum("nhwc,cd->nhwd", z, p["w3"]) * p["s3"] + p["b3"]
    if stride == 1 and Cin == o.shape[-1]:
        o = o + x
    return jnp.transpose(o, (0, 3, 1, 2))


# ----------------------------------------------------------------------------
if __name__ == "__main__":
    key = jax.random.PRNGKey(0)
    kx1, kp1, kx2, kp2 = jax.random.split(key, 4)

    # Case 1: stride=1, Cin == Cout -> residual path exercised.
    N, Cin, H, W = 2, 8, 16, 16
    Cout, stride, t = 8, 1, 6
    x1 = jax.random.normal(kx1, (N, Cin, H, W), jnp.float32)
    p1 = make_params(kp1, Cin, Cout, t)
    out1 = jax.block_until_ready(linear_bottleneck_forward(x1, p1, stride))
    ref1 = ref_forward(x1, p1, stride)
    assert out1.shape == ref1.shape == (N, Cout, H, W)
    assert jnp.allclose(out1, ref1, atol=1e-4, rtol=1e-4), "mismatch (stride=1)"

    # Case 2: stride=2, channel change -> strided depthwise, no residual.
    Cout2, stride2 = 16, 2
    x2 = jax.random.normal(kx2, (N, Cin, H, W), jnp.float32)
    p2 = make_params(kp2, Cin, Cout2, t)
    out2 = jax.block_until_ready(linear_bottleneck_forward(x2, p2, stride2))
    ref2 = ref_forward(x2, p2, stride2)
    assert out2.shape == ref2.shape == (N, Cout2, H // 2, W // 2)
    assert jnp.allclose(out2, ref2, atol=1e-4, rtol=1e-4), "mismatch (stride=2)"

    print("KERNEL_OK")
</pallas_src>

<mosaic_0001>
module attributes {stable_mosaic.version = 11 : i64} {
  func.func @_fused_kernel(%arg0: i32, %arg1: i32, %arg2: memref<1x18x24x8xf32, #tpu.memory_space<vmem>>, %arg3: memref<1x8x256xf32, #tpu.memory_space<vmem>>, %arg4: memref<8x48xf32, #tpu.memory_space<vmem>>, %arg5: memref<1x48xf32, #tpu.memory_space<vmem>>, %arg6: memref<3x3x48xf32, #tpu.memory_space<vmem>>, %arg7: memref<1x48xf32, #tpu.memory_space<vmem>>, %arg8: memref<8x48xf32, #tpu.memory_space<vmem>>, %arg9: memref<8x1xf32, #tpu.memory_space<vmem>>, %arg10: memref<1x8x256xf32, #tpu.memory_space<vmem>>) attributes {dimension_semantics = [#tpu.dimension_semantics<parallel>, #tpu.dimension_semantics<parallel>], iteration_bounds = array<i64: 2, 1>, scalar_prefetch = 0 : i64, scratch_operands = 0 : i64, tpu.core_type = #tpu.core_type<tc>, window_params = [{transform_indices = @transform_0, window_bounds = array<i64: 1, 18, 24, 8>}, {transform_indices = @transform_1, window_bounds = array<i64: 1, 8, 256>}, {pipeline_mode = #tpu.pipeline_mode<synchronous>, transform_indices = @transform_2, window_bounds = array<i64: 8, 48>}, {pipeline_mode = #tpu.pipeline_mode<synchronous>, transform_indices = @transform_3, window_bounds = array<i64: 1, 48>}, {pipeline_mode = #tpu.pipeline_mode<synchronous>, transform_indices = @transform_4, window_bounds = array<i64: 3, 3, 48>}, {pipeline_mode = #tpu.pipeline_mode<synchronous>, transform_indices = @transform_5, window_bounds = array<i64: 1, 48>}, {pipeline_mode = #tpu.pipeline_mode<synchronous>, transform_indices = @transform_6, window_bounds = array<i64: 8, 48>}, {pipeline_mode = #tpu.pipeline_mode<synchronous>, transform_indices = @transform_7, window_bounds = array<i64: 8, 1>}, {transform_indices = @transform_8, window_bounds = array<i64: 1, 8, 256>}]} {
    %c16_i32 = arith.constant 16 : i32
    %0 = arith.muli %arg1, %c16_i32 : i32
    %c0 = arith.constant 0 : index
    %1 = arith.index_cast %0 : i32 to index
    %c0_0 = arith.constant 0 : index
    %c0_1 = arith.constant 0 : index
    %2 = vector.load %arg2[%c0, %1, %c0_0, %c0_1] : memref<1x18x24x8xf32, #tpu.memory_space<vmem>>, vector<1x18x24x8xf32>
    %3 = vector.shape_cast %2 : vector<1x18x24x8xf32> to vector<18x24x8xf32>
    %4 = vector.shape_cast %3 : vector<18x24x8xf32> to vector<432x8xf32>
    %c0_2 = arith.constant 0 : index
    %c0_3 = arith.constant 0 : index
    %5 = vector.load %arg4[%c0_2, %c0_3] : memref<8x48xf32, #tpu.memory_space<vmem>>, vector<8x48xf32>
    %cst = arith.constant dense<0.000000e+00> : vector<432x48xf32>
    %6 = tpu.matmul %4, %5, %cst {dimension_numbers = #tpu.dot_dimension_numbers<[1], [0], [0], [1], [0, 0, 1, 1], [], []>} : vector<432x8xf32>, vector<8x48xf32>, vector<432x48xf32> -> vector<432x48xf32>
    %c0_4 = arith.constant 0 : index
    %c0_5 = arith.constant 0 : index
    %7 = vector.load %arg5[%c0_4, %c0_5] : memref<1x48xf32, #tpu.memory_space<vmem>>, vector<1x48xf32>
    %8 = vector.broadcast %7 : vector<1x48xf32> to vector<432x48xf32>
    %9 = arith.addf %6, %8 : vector<432x48xf32>
    %cst_6 = arith.constant 0.000000e+00 : f32
    %cst_7 = arith.constant 6.000000e+00 : f32
    %10 = vector.broadcast %cst_6 : f32 to vector<432x48xf32>
    %11 = arith.maximumf %10, %9 : vector<432x48xf32>
    %12 = vector.broadcast %cst_7 : f32 to vector<432x48xf32>
    %13 = arith.minimumf %12, %11 : vector<432x48xf32>
    %14 = vector.shape_cast %13 : vector<432x48xf32> to vector<18x24x48xf32>
    %15 = tpu.iota {dimensions = array<i32: 0>} : vector<18x1x1xi32>
    %16 = vector.broadcast %0 : i32 to vector<18x1x1xi32>
    %17 = arith.addi %16, %15 : vector<18x1x1xi32>
    %18 = tpu.iota {dimensions = array<i32: 1>} : vector<1x24x1xi32>
    %c1_i32 = arith.constant 1 : i32
    %19 = vector.broadcast %c1_i32 : i32 to vector<18x1x1xi32>
    %20 = arith.cmpi sge, %17, %19 : vector<18x1x1xi32>
    %c16_i32_8 = arith.constant 16 : i32
    %21 = vector.broadcast %c16_i32_8 : i32 to vector<18x1x1xi32>
    %22 = arith.cmpi sle, %17, %21 : vector<18x1x1xi32>
    %23 = arith.andi %20, %22 : vector<18x1x1xi1>
    %c1_i32_9 = arith.constant 1 : i32
    %24 = vector.broadcast %c1_i32_9 : i32 to vector<1x24x1xi32>
    %25 = arith.cmpi sge, %18, %24 : vector<1x24x1xi32>
    %26 = vector.broadcast %23 : vector<18x1x1xi1> to vector<18x24x1xi1>
    %27 = vector.broadcast %25 : vector<1x24x1xi1> to vector<18x24x1xi1>
    %28 = arith.andi %26, %27 : vector<18x24x1xi1>
    %c16_i32_10 = arith.constant 16 : i32
    %29 = vector.broadcast %c16_i32_10 : i32 to vector<1x24x1xi32>
    %30 = arith.cmpi sle, %18, %29 : vector<1x24x1xi32>
    %31 = vector.broadcast %30 : vector<1x24x1xi1> to vector<18x24x1xi1>
    %32 = arith.andi %28, %31 : vector<18x24x1xi1>
    %cst_11 = arith.constant 0.000000e+00 : f32
    %33 = vector.shape_cast %32 : vector<18x24x1xi1> to vector<18x24x1xi1>
    %34 = vector.broadcast %33 : vector<18x24x1xi1> to vector<18x24x48xi1>
    %35 = vector.broadcast %cst_11 : f32 to vector<18x24x48xf32>
    %36 = arith.select %34, %14, %35 : vector<18x24x48xi1>, vector<18x24x48xf32>
    %c0_12 = arith.constant 0 : index
    %c0_13 = arith.constant 0 : index
    %c0_14 = arith.constant 0 : index
    %37 = vector.load %arg6[%c0_12, %c0_13, %c0_14] : memref<3x3x48xf32, #tpu.memory_space<vmem>>, vector<3x3x48xf32>
    %cst_15 = arith.constant 0.000000e+00 : f32
    %38 = vector.broadcast %cst_15 : f32 to vector<16x16x48xf32>
    %39 = vector.extract_strided_slice %36 {offsets = [0, 0, 0], sizes = [16, 16, 48], strides = [1, 1, 1]} : vector<18x24x48xf32> to vector<16x16x48xf32>
    %40 = vector.extract_strided_slice %37 {offsets = [0, 0, 0], sizes = [1, 1, 48], strides = [1, 1, 1]} : vector<3x3x48xf32> to vector<1x1x48xf32>
    %41 = vector.shape_cast %40 : vector<1x1x48xf32> to vector<48xf32>
    %42 = vector.shape_cast %41 : vector<48xf32> to vector<1x1x48xf32>
    %43 = vector.broadcast %42 : vector<1x1x48xf32> to vector<16x16x48xf32>
    %44 = arith.mulf %39, %43 : vector<16x16x48xf32>
    %45 = arith.addf %38, %44 : vector<16x16x48xf32>
    %46 = vector.extract_strided_slice %36 {offsets = [0, 1, 0], sizes = [16, 16, 48], strides = [1, 1, 1]} : vector<18x24x48xf32> to vector<16x16x48xf32>
    %47 = vector.extract_strided_slice %37 {offsets = [0, 1, 0], sizes = [1, 1, 48], strides = [1, 1, 1]} : vector<3x3x48xf32> to vector<1x1x48xf32>
    %48 = vector.shape_cast %47 : vector<1x1x48xf32> to vector<48xf32>
    %49 = vector.shape_cast %48 : vector<48xf32> to vector<1x1x48xf32>
    %50 = vector.broadcast %49 : vector<1x1x48xf32> to vector<16x16x48xf32>
    %51 = arith.mulf %46, %50 : vector<16x16x48xf32>
    %52 = arith.addf %45, %51 : vector<16x16x48xf32>
    %53 = vector.extract_strided_slice %36 {offsets = [0, 2, 0], sizes = [16, 16, 48], strides = [1, 1, 1]} : vector<18x24x48xf32> to vector<16x16x48xf32>
    %54 = vector.extract_strided_slice %37 {offsets = [0, 2, 0], sizes = [1, 1, 48], strides = [1, 1, 1]} : vector<3x3x48xf32> to vector<1x1x48xf32>
    %55 = vector.shape_cast %54 : vector<1x1x48xf32> to vector<48xf32>
    %56 = vector.shape_cast %55 : vector<48xf32> to vector<1x1x48xf32>
    %57 = vector.broadcast %56 : vector<1x1x48xf32> to vector<16x16x48xf32>
    %58 = arith.mulf %53, %57 : vector<16x16x48xf32>
    %59 = arith.addf %52, %58 : vector<16x16x48xf32>
    %60 = vector.extract_strided_slice %36 {offsets = [1, 0, 0], sizes = [16, 16, 48], strides = [1, 1, 1]} : vector<18x24x48xf32> to vector<16x16x48xf32>
    %61 = vector.extract_strided_slice %37 {offsets = [1, 0, 0], sizes = [1, 1, 48], strides = [1, 1, 1]} : vector<3x3x48xf32> to vector<1x1x48xf32>
    %62 = vector.shape_cast %61 : vector<1x1x48xf32> to vector<48xf32>
    %63 = vector.shape_cast %62 : vector<48xf32> to vector<1x1x48xf32>
    %64 = vector.broadcast %63 : vector<1x1x48xf32> to vector<16x16x48xf32>
    %65 = arith.mulf %60, %64 : vector<16x16x48xf32>
    %66 = arith.addf %59, %65 : vector<16x16x48xf32>
    %67 = vector.extract_strided_slice %36 {offsets = [1, 1, 0], sizes = [16, 16, 48], strides = [1, 1, 1]} : vector<18x24x48xf32> to vector<16x16x48xf32>
    %68 = vector.extract_strided_slice %37 {offsets = [1, 1, 0], sizes = [1, 1, 48], strides = [1, 1, 1]} : vector<3x3x48xf32> to vector<1x1x48xf32>
    %69 = vector.shape_cast %68 : vector<1x1x48xf32> to vector<48xf32>
    %70 = vector.shape_cast %69 : vector<48xf32> to vector<1x1x48xf32>
    %71 = vector.broadcast %70 : vector<1x1x48xf32> to vector<16x16x48xf32>
    %72 = arith.mulf %67, %71 : vector<16x16x48xf32>
    %73 = arith.addf %66, %72 : vector<16x16x48xf32>
    %74 = vector.extract_strided_slice %36 {offsets = [1, 2, 0], sizes = [16, 16, 48], strides = [1, 1, 1]} : vector<18x24x48xf32> to vector<16x16x48xf32>
    %75 = vector.extract_strided_slice %37 {offsets = [1, 2, 0], sizes = [1, 1, 48], strides = [1, 1, 1]} : vector<3x3x48xf32> to vector<1x1x48xf32>
    %76 = vector.shape_cast %75 : vector<1x1x48xf32> to vector<48xf32>
    %77 = vector.shape_cast %76 : vector<48xf32> to vector<1x1x48xf32>
    %78 = vector.broadcast %77 : vector<1x1x48xf32> to vector<16x16x48xf32>
    %79 = arith.mulf %74, %78 : vector<16x16x48xf32>
    %80 = arith.addf %73, %79 : vector<16x16x48xf32>
    %81 = vector.extract_strided_slice %36 {offsets = [2, 0, 0], sizes = [16, 16, 48], strides = [1, 1, 1]} : vector<18x24x48xf32> to vector<16x16x48xf32>
    %82 = vector.extract_strided_slice %37 {offsets = [2, 0, 0], sizes = [1, 1, 48], strides = [1, 1, 1]} : vector<3x3x48xf32> to vector<1x1x48xf32>
    %83 = vector.shape_cast %82 : vector<1x1x48xf32> to vector<48xf32>
    %84 = vector.shape_cast %83 : vector<48xf32> to vector<1x1x48xf32>
    %85 = vector.broadcast %84 : vector<1x1x48xf32> to vector<16x16x48xf32>
    %86 = arith.mulf %81, %85 : vector<16x16x48xf32>
    %87 = arith.addf %80, %86 : vector<16x16x48xf32>
    %88 = vector.extract_strided_slice %36 {offsets = [2, 1, 0], sizes = [16, 16, 48], strides = [1, 1, 1]} : vector<18x24x48xf32> to vector<16x16x48xf32>
    %89 = vector.extract_strided_slice %37 {offsets = [2, 1, 0], sizes = [1, 1, 48], strides = [1, 1, 1]} : vector<3x3x48xf32> to vector<1x1x48xf32>
    %90 = vector.shape_cast %89 : vector<1x1x48xf32> to vector<48xf32>
    %91 = vector.shape_cast %90 : vector<48xf32> to vector<1x1x48xf32>
    %92 = vector.broadcast %91 : vector<1x1x48xf32> to vector<16x16x48xf32>
    %93 = arith.mulf %88, %92 : vector<16x16x48xf32>
    %94 = arith.addf %87, %93 : vector<16x16x48xf32>
    %95 = vector.extract_strided_slice %36 {offsets = [2, 2, 0], sizes = [16, 16, 48], strides = [1, 1, 1]} : vector<18x24x48xf32> to vector<16x16x48xf32>
    %96 = vector.extract_strided_slice %37 {offsets = [2, 2, 0], sizes = [1, 1, 48], strides = [1, 1, 1]} : vector<3x3x48xf32> to vector<1x1x48xf32>
    %97 = vector.shape_cast %96 : vector<1x1x48xf32> to vector<48xf32>
    %98 = vector.shape_cast %97 : vector<48xf32> to vector<1x1x48xf32>
    %99 = vector.broadcast %98 : vector<1x1x48xf32> to vector<16x16x48xf32>
    %100 = arith.mulf %95, %99 : vector<16x16x48xf32>
    %101 = arith.addf %94, %100 : vector<16x16x48xf32>
    %c0_16 = arith.constant 0 : index
    %c0_17 = arith.constant 0 : index
    %102 = vector.load %arg7[%c0_16, %c0_17] : memref<1x48xf32, #tpu.memory_space<vmem>>, vector<1x48xf32>
    %103 = vector.shape_cast %102 : vector<1x48xf32> to vector<1x1x48xf32>
    %104 = vector.broadcast %103 : vector<1x1x48xf32> to vector<16x16x48xf32>
    %105 = arith.addf %101, %104 : vector<16x16x48xf32>
    %cst_18 = arith.constant 0.000000e+00 : f32
    %cst_19 = arith.constant 6.000000e+00 : f32
    %106 = vector.broadcast %cst_18 : f32 to vector<16x16x48xf32>
    %107 = arith.maximumf %106, %105 : vector<16x16x48xf32>
    %108 = vector.broadcast %cst_19 : f32 to vector<16x16x48xf32>
    %109 = arith.minimumf %108, %107 : vector<16x16x48xf32>
    %110 = vector.shape_cast %109 : vector<16x16x48xf32> to vector<256x48xf32>
    %c0_20 = arith.constant 0 : index
    %c0_21 = arith.constant 0 : index
    %111 = vector.load %arg8[%c0_20, %c0_21] : memref<8x48xf32, #tpu.memory_space<vmem>>, vector<8x48xf32>
    %cst_22 = arith.constant dense<0.000000e+00> : vector<8x256xf32>
    %112 = tpu.matmul %111, %110, %cst_22 {dimension_numbers = #tpu.dot_dimension_numbers<[1], [1], [0], [0], [0, 0, 1, 0], [], []>} : vector<8x48xf32>, vector<256x48xf32>, vector<8x256xf32> -> vector<8x256xf32>
    %c0_23 = arith.constant 0 : index
    %c0_24 = arith.constant 0 : index
    %113 = vector.load %arg9[%c0_23, %c0_24] : memref<8x1xf32, #tpu.memory_space<vmem>>, vector<8x1xf32>
    %114 = vector.broadcast %113 : vector<8x1xf32> to vector<8x256xf32>
    %115 = arith.addf %112, %114 : vector<8x256xf32>
    %c0_25 = arith.constant 0 : index
    %c0_26 = arith.constant 0 : index
    %c0_27 = arith.constant 0 : index
    %116 = vector.load %arg3[%c0_25, %c0_26, %c0_27] : memref<1x8x256xf32, #tpu.memory_space<vmem>>, vector<1x8x256xf32>
    %117 = vector.shape_cast %116 : vector<1x8x256xf32> to vector<8x256xf32>
    %118 = arith.addf %115, %117 : vector<8x256xf32>
    %c0_28 = arith.constant 0 : index
    %c0_29 = arith.constant 0 : index
    %c0_30 = arith.constant 0 : index
    %119 = vector.load %arg10[%c0_28, %c0_29, %c0_30] : memref<1x8x256xf32, #tpu.memory_space<vmem>>, vector<1x8x256xf32>
    %120 = vector.shape_cast %119 : vector<1x8x256xf32> to vector<8x256xf32>
    %121 = vector.shape_cast %118 : vector<8x256xf32> to vector<1x8x256xf32>
    tpu.vector_store %arg10[%c0_28, %c0_29, %c0_30], %121 {strides = array<i32>} : memref<1x8x256xf32, #tpu.memory_space<vmem>>, vector<1x8x256xf32>,
    return
  }
  func.func @transform_0(%arg0: i32, %arg1: i32) -> (i32, i32, i32, i32) {
    %c0_i32 = arith.constant 0 : i32
    %c0_i32_0 = arith.constant 0 : i32
    %c0_i32_1 = arith.constant 0 : i32
    %c0_i32_2 = arith.constant 0 : i32
    return %arg0, %c0_i32, %c0_i32_0, %c0_i32_1 : i32, i32, i32, i32
  }
  func.func @transform_1(%arg0: i32, %arg1: i32) -> (i32, i32, i32) {
    %c0_i32 = arith.constant 0 : i32
    %c0_i32_0 = arith.constant 0 : i32
    return %arg0, %c0_i32, %arg1 : i32, i32, i32
  }
  func.func @transform_2(%arg0: i32, %arg1: i32) -> (i32, i32) {
    %c0_i32 = arith.constant 0 : i32
    %c0_i32_0 = arith.constant 0 : i32
    %c0_i32_1 = arith.constant 0 : i32
    return %c0_i32, %c0_i32_0 : i32, i32
  }
  func.func @transform_3(%arg0: i32, %arg1: i32) -> (i32, i32) {
    %c0_i32 = arith.constant 0 : i32
    %c0_i32_0 = arith.constant 0 : i32
    %c0_i32_1 = arith.constant 0 : i32
    return %c0_i32, %c0_i32_0 : i32, i32
  }
  func.func @transform_4(%arg0: i32, %arg1: i32) -> (i32, i32, i32) {
    %c0_i32 = arith.constant 0 : i32
    %c0_i32_0 = arith.constant 0 : i32
    %c0_i32_1 = arith.constant 0 : i32
    %c0_i32_2 = arith.constant 0 : i32
    return %c0_i32, %c0_i32_0, %c0_i32_1 : i32, i32, i32
  }
  func.func @transform_5(%arg0: i32, %arg1: i32) -> (i32, i32) {
    %c0_i32 = arith.constant 0 : i32
    %c0_i32_0 = arith.constant 0 : i32
    %c0_i32_1 = arith.constant 0 : i32
    return %c0_i32, %c0_i32_0 : i32, i32
  }
  func.func @transform_6(%arg0: i32, %arg1: i32) -> (i32, i32) {
    %c0_i32 = arith.constant 0 : i32
    %c0_i32_0 = arith.constant 0 : i32
    %c0_i32_1 = arith.constant 0 : i32
    return %c0_i32, %c0_i32_0 : i32, i32
  }
  func.func @transform_7(%arg0: i32, %arg1: i32) -> (i32, i32) {
    %c0_i32 = arith.constant 0 : i32
    %c0_i32_0 = arith.constant 0 : i32
    %c0_i32_1 = arith.constant 0 : i32
    return %c0_i32, %c0_i32_0 : i32, i32
  }
  func.func @transform_8(%arg0: i32, %arg1: i32) -> (i32, i32, i32) {
    %c0_i32 = arith.constant 0 : i32
    %c0_i32_0 = arith.constant 0 : i32
    return %arg0, %c0_i32, %arg1 : i32, i32, i32
  }
}

</mosaic_0001>

<llo_original>
// kernel: tpu_custom_call.1
$region0: #{tpu_custom_call.1}
  #allocation0 [shape = 'u32[]', space=smem, size = 0x4, offset = 0x4, fixed_abs, tag = 'smem constant byte address 0x4 - core index']
  #allocation1 [shape = 'u32[72,128]{1,0:T(1,128)}', space=vmem, size = 0x9000, scoped, tag = 'internal scratch']
  %s0 = inlined_call_operand.vmem [shape: f32[2,18,24,8], index: 0, kind: input, shape index: {}]
  %s1 = inlined_call_operand.vmem [shape: f32[2,8,256], index: 1, kind: input, shape index: {}]
  %s2 = inlined_call_operand.vmem [shape: f32[8,48], index: 2, kind: input, shape index: {}]
  %s3 = inlined_call_operand.vmem [shape: f32[1,48], index: 3, kind: input, shape index: {}]
  %s4 = inlined_call_operand.vmem [shape: f32[3,3,48], index: 4, kind: input, shape index: {}]
  %s5 = inlined_call_operand.vmem [shape: f32[1,48], index: 5, kind: input, shape index: {}]
  %s6 = inlined_call_operand.vmem [shape: f32[8,48], index: 6, kind: input, shape index: {}]
  %s7 = inlined_call_operand.vmem [shape: f32[8,1], index: 7, kind: input, shape index: {}]
  %s8 = inlined_call_operand.hbm [shape: f32[2,8,256], index: 8, kind: output, shape index: {}]
  %s9 = sld [smem:[#allocation0]]
  $region65: #{tpu_custom_call.1} parent=0
    _
  %s11 = ssub.s32 1, %s9
  %s12 = scalar_select 0, %s11, %s9
  $region1: #{tpu_custom_call.1} parent=0
    #allocation2 [shape = 'u8[16384]{0}', space=vmem, size = 0x4000, scoped, tag = 'output window, operand 0']
    #allocation3 [shape = 's32[2]{0}', space=sflag, size = 0x8, scoped, tag = 'scoped memory for tpu_custom_call.1']
    %13 = vsyncpa [#allocation3], 0
    %s14 = scalar_lea.sflag [#allocation3], 1
    %15 = vsyncpa %s14, 0
    loop: start=0, step=1, limit=4
    $region2: #{tpu_custom_call.1} parent=1 // loop_pre_header
      _
    $region3: #{tpu_custom_call.1} parent=1 // loop_header
      %s17 = sphi 0, %s21
      %p18 = scmp.ge.s32.totalorder %s17, 4
      %s24 = sphi 0, %s36
      %s25 = sphi 0, %s32
      %s26 = sphi 0, %s24
      %s27 = sphi 0, %s25
      %s28 = sphi 0, %s26
      %s29 = sphi 0, %s27
      %s39 = sphi 0, %s41
      %s42 = sphi 0, %s39
      %s43 = sphi 0, %s42
      %s59 = sphi 0, %s43
      %s67 = sphi 0, %s69
      %s70 = sphi 0, %s67
      %s71 = sphi 0, %s70
      %s87 = sphi 0, %s71
      %s91 = sphi 0, %s91
      %s93 = sphi 0, %s91
      %s94 = sphi 0, %s93
      %s108 = sphi 0, %s94
      %s112 = sphi 0, %s112
      %s114 = sphi 0, %s112
      %s115 = sphi 0, %s114
      %s129 = sphi 0, %s115
      %s133 = sphi 0, %s133
      %s135 = sphi 0, %s133
      %s136 = sphi 0, %s135
      %s150 = sphi 0, %s136
      %s154 = sphi 0, %s154
      %s156 = sphi 0, %s154
      %s157 = sphi 0, %s156
      %s171 = sphi 0, %s157
      %s175 = sphi 0, %s175
      %s177 = sphi 0, %s175
      %s178 = sphi 0, %s177
      %s192 = sphi 0, %s178
      %s196 = sphi 0, %s196
      %s198 = sphi 0, %s196
      %s199 = sphi 0, %s198
      %s213 = sphi 0, %s199
      %s221 = sphi 0, %s223
      %s224 = sphi 0, %s221
      %s225 = sphi 0, %s224
      %s241 = sphi 0, %s225
    $region4: #{tpu_custom_call.1} parent=1 // loop_header_branch
      %20 = sbr.rel (%p18) target = $region8
    $region5: #{tpu_custom_call.1} parent=1 // loop_body
      %s22 = ssub.s32 %s17, 1
      %s23 = ssub.s32 %s17, 2
      %s30 = sadd.s32 1, %s25
      %p31 = scmp.ge.s32.totalorder %s30, 1
      %s32 = scalar_select %p31, 0, %s30
      %s33 = sadd.s32 1, %s24
      %s34 = scalar_select %p31, %s33, %s24
      %p35 = scmp.ge.s32.totalorder %s34, 2
      %s36 = scalar_select %p35, 0, %s34
      %s37 = ssub.s32 %s24, %s36
      %p38 = scmp.eq.s32.totalorder %s37, 0
      %s40 = sadd.s32 %s39, 1
      %s41 = scalar_select %p38, %s39, %s40
      %p44 = pneg %p38
      %p45 = scmp.eq.s32.totalorder %s17, 1
      %p46 = por %p44, %p45
      %p47 = scmp.ne.s32.totalorder %s39, %s42
      %p48 = scmp.eq.s32.totalorder %s17, 0
      %p49 = por %p47, %p48
      %p50 = scmp.ne.s32.totalorder %s39, %s42
      %p51 = scmp.eq.s32.totalorder %s22, 1
      %p52 = por %p50, %p51
      %p53 = scmp.ne.s32.totalorder %s42, %s43
      %p54 = scmp.eq.s32.totalorder %s22, 0
      %p55 = por %p53, %p54
      %p56 = scmp.ne.s32.totalorder %s42, %s43
      %p57 = scmp.eq.s32.totalorder %s23, 1
      %p58 = por %p56, %p57
      %p60 = scmp.ne.s32.totalorder %s43, %s59
      %p61 = scmp.eq.s32.totalorder %s23, 0
      %p62 = por %p60, %p61
      %s63 = ssub.s32 %s24, %s36
      %s64 = ssub.s32 %s25, %s32
      %s65 = sor.u32 %s63, %s64
      %p66 = scmp.eq.s32.totalorder %s65, 0
      %s68 = sadd.s32 %s67, 1
      %s69 = scalar_select %p66, %s67, %s68
      %p72 = pneg %p66
      %p73 = scmp.eq.s32.totalorder %s17, 1
      %p74 = por %p72, %p73
      %p75 = scmp.ne.s32.totalorder %s67, %s70
      %p76 = scmp.eq.s32.totalorder %s17, 0
      %p77 = por %p75, %p76
      %p78 = scmp.ne.s32.totalorder %s67, %s70
      %p79 = scmp.eq.s32.totalorder %s22, 1
      %p80 = por %p78, %p79
      %p81 = scmp.ne.s32.totalorder %s70, %s71
      %p82 = scmp.eq.s32.totalorder %s22, 0
      %p83 = por %p81, %p82
      %p84 = scmp.ne.s32.totalorder %s70, %s71
      %p85 = scmp.eq.s32.totalorder %s23, 1
      %p86 = por %p84, %p85
      %p88 = scmp.ne.s32.totalorder %s71, %s87
      %p89 = scmp.eq.s32.totalorder %s23, 0
      %p90 = por %p88, %p89
      %s92 = sadd.s32 %s91, 1
      %p95 = scmp.eq.s32.totalorder %s17, 1
      %p96 = scmp.ne.s32.totalorder %s91, %s93
      %p97 = scmp.eq.s32.totalorder %s17, 0
      %p98 = por %p96, %p97
      %p99 = scmp.ne.s32.totalorder %s91, %s93
      %p100 = scmp.eq.s32.totalorder %s22, 1
      %p101 = por %p99, %p100
      %p102 = scmp.ne.s32.totalorder %s93, %s94
      %p103 = scmp.eq.s32.totalorder %s22, 0
      %p104 = por %p102, %p103
      %p105 = scmp.ne.s32.totalorder %s93, %s94
      %p106 = scmp.eq.s32.totalorder %s23, 1
      %p107 = por %p105, %p106
      %p109 = scmp.ne.s32.totalorder %s94, %s108
      %p110 = scmp.eq.s32.totalorder %s23, 0
      %p111 = por %p109, %p110
      %s113 = sadd.s32 %s112, 1
      %p116 = scmp.eq.s32.totalorder %s17, 1
      %p117 = scmp.ne.s32.totalorder %s112, %s114
      %p118 = scmp.eq.s32.totalorder %s17, 0
      %p119 = por %p117, %p118
      %p120 = scmp.ne.s32.totalorder %s112, %s114
      %p121 = scmp.eq.s32.totalorder %s22, 1
      %p122 = por %p120, %p121
      %p123 = scmp.ne.s32.totalorder %s114, %s115
      %p124 = scmp.eq.s32.totalorder %s22, 0
      %p125 = por %p123, %p124
      %p126 = scmp.ne.s32.totalorder %s114, %s115
      %p127 = scmp.eq.s32.totalorder %s23, 1
      %p128 = por %p126, %p127
      %p130 = scmp.ne.s32.totalorder %s115, %s129
      %p131 = scmp.eq.s32.totalorder %s23, 0
      %p132 = por %p130, %p131
      %s134 = sadd.s32 %s133, 1
      %p137 = scmp.eq.s32.totalorder %s17, 1
      %p138 = scmp.ne.s32.totalorder %s133, %s135
      %p139 = scmp.eq.s32.totalorder %s17, 0
      %p140 = por %p138, %p139
      %p141 = scmp.ne.s32.totalorder %s133, %s135
      %p142 = scmp.eq.s32.totalorder %s22, 1
      %p143 = por %p141, %p142
      %p144 = scmp.ne.s32.totalorder %s135, %s136
      %p145 = scmp.eq.s32.totalorder %s22, 0
      %p146 = por %p144, %p145
      %p147 = scmp.ne.s32.totalorder %s135, %s136
      %p148 = scmp.eq.s32.totalorder %s23, 1
      %p149 = por %p147, %p148
      %p151 = scmp.ne.s32.totalorder %s136, %s150
      %p152 = scmp.eq.s32.totalorder %s23, 0
      %p153 = por %p151, %p152
      %s155 = sadd.s32 %s154, 1
      %p158 = scmp.eq.s32.totalorder %s17, 1
      %p159 = scmp.ne.s32.totalorder %s154, %s156
      %p160 = scmp.eq.s32.totalorder %s17, 0
      %p161 = por %p159, %p160
      %p162 = scmp.ne.s32.totalorder %s154, %s156
      %p163 = scmp.eq.s32.totalorder %s22, 1
      %p164 = por %p162, %p163
      %p165 = scmp.ne.s32.totalorder %s156, %s157
      %p166 = scmp.eq.s32.totalorder %s22, 0
      %p167 = por %p165, %p166
      %p168 = scmp.ne.s32.totalorder %s156, %s157
      %p169 = scmp.eq.s32.totalorder %s23, 1
      %p170 = por %p168, %p169
      %p172 = scmp.ne.s32.totalorder %s157, %s171
      %p173 = scmp.eq.s32.totalorder %s23, 0
      %p174 = por %p172, %p173
      %s176 = sadd.s32 %s175, 1
      %p179 = scmp.eq.s32.totalorder %s17, 1
      %p180 = scmp.ne.s32.totalorder %s175, %s177
      %p181 = scmp.eq.s32.totalorder %s17, 0
      %p182 = por %p180, %p181
      %p183 = scmp.ne.s32.totalorder %s175, %s177
      %p184 = scmp.eq.s32.totalorder %s22, 1
      %p185 = por %p183, %p184
      %p186 = scmp.ne.s32.totalorder %s177, %s178
      %p187 = scmp.eq.s32.totalorder %s22, 0
      %p188 = por %p186, %p187
      %p189 = scmp.ne.s32.totalorder %s177, %s178
      %p190 = scmp.eq.s32.totalorder %s23, 1
      %p191 = por %p189, %p190
      %p193 = scmp.ne.s32.totalorder %s178, %s192
      %p194 = scmp.eq.s32.totalorder %s23, 0
      %p195 = por %p193, %p194
      %s197 = sadd.s32 %s196, 1
      %p200 = scmp.eq.s32.totalorder %s17, 1
      %p201 = scmp.ne.s32.totalorder %s196, %s198
      %p202 = scmp.eq.s32.totalorder %s17, 0
      %p203 = por %p201, %p202
      %p204 = scmp.ne.s32.totalorder %s196, %s198
      %p205 = scmp.eq.s32.totalorder %s22, 1
      %p206 = por %p204, %p205
      %p207 = scmp.ne.s32.totalorder %s198, %s199
      %p208 = scmp.eq.s32.totalorder %s22, 0
      %p209 = por %p207, %p208
      %p210 = scmp.ne.s32.totalorder %s198, %s199
      %p211 = scmp.eq.s32.totalorder %s23, 1
      %p212 = por %p210, %p211
      %p214 = scmp.ne.s32.totalorder %s199, %s213
      %p215 = scmp.eq.s32.totalorder %s23, 0
      %p216 = por %p214, %p215
      %s217 = ssub.s32 %s24, %s36
      %s218 = ssub.s32 %s25, %s32
      %s219 = sor.u32 %s217, %s218
      %p220 = scmp.eq.s32.totalorder %s219, 0
      %s222 = sadd.s32 %s221, 1
      %s223 = scalar_select %p220, %s221, %s222
      %p226 = pneg %p220
      %p227 = scmp.eq.s32.totalorder %s17, 1
      %p228 = por %p226, %p227
      %p229 = scmp.ne.s32.totalorder %s221, %s224
      %p230 = scmp.eq.s32.totalorder %s17, 0
      %p231 = por %p229, %p230
      %p232 = scmp.ne.s32.totalorder %s221, %s224
      %p233 = scmp.eq.s32.totalorder %s22, 1
      %p234 = por %p232, %p233
      %p235 = scmp.ne.s32.totalorder %s224, %s225
      %p236 = scmp.eq.s32.totalorder %s22, 0
      %p237 = por %p235, %p236
      %p238 = scmp.ne.s32.totalorder %s224, %s225
      %p239 = scmp.eq.s32.totalorder %s23, 1
      %p240 = por %p238, %p239
      %p242 = scmp.ne.s32.totalorder %s225, %s241
      %p243 = scmp.eq.s32.totalorder %s23, 0
      %p244 = por %p242, %p243
      %p245 = scmp.le.s32.totalorder 1, %s17
      %p246 = scmp.lt.s32.totalorder %s17, 3
      %p247 = pnand %p245, %p246
      %p248 = pneg %p247
      // Predicated region
      $region9: #{tpu_custom_call.1} parent=5 // pred_check
        _
      $region10: #{tpu_custom_call.1} parent=5 // pred_check_branch
        %250 = sbr.rel (%p247) target = $region12
      $region11: #{tpu_custom_call.1} parent=5 // pred_region
        %s251 = ssub.s32 %s17, 1
        // Predicated region
        $region13: #{tpu_custom_call.1} parent=11 // pred_check
          %p252 = pneg %p104
        $region14: #{tpu_custom_call.1} parent=11 // pred_check_branch
          %254 = sbr.rel (%p252) target = $region16
        $region15: #{tpu_custom_call.1} parent=11 // pred_region
          _
        $region16: #{tpu_custom_call.1} parent=11 // pred_fallthru
          _
        // Predicated region
        $region17: #{tpu_custom_call.1} parent=11 // pred_check
          %p255 = pneg %p125
        $region18: #{tpu_custom_call.1} parent=11 // pred_check_branch
          %257 = sbr.rel (%p255) target = $region20
        $region19: #{tpu_custom_call.1} parent=11 // pred_region
          _
        $region20: #{tpu_custom_call.1} parent=11 // pred_fallthru
          _
        // Predicated region
        $region21: #{tpu_custom_call.1} parent=11 // pred_check
          %p258 = pneg %p146
        $region22: #{tpu_custom_call.1} parent=11 // pred_check_branch
          %260 = sbr.rel (%p258) target = $region24
        $region23: #{tpu_custom_call.1} parent=11 // pred_region
          _
        $region24: #{tpu_custom_call.1} parent=11 // pred_fallthru
          _
        // Predicated region
        $region25: #{tpu_custom_call.1} parent=11 // pred_check
          %p261 = pneg %p167
        $region26: #{tpu_custom_call.1} parent=11 // pred_check_branch
          %263 = sbr.rel (%p261) target = $region28
        $region27: #{tpu_custom_call.1} parent=11 // pred_region
          _
        $region28: #{tpu_custom_call.1} parent=11 // pred_fallthru
          _
        // Predicated region
        $region29: #{tpu_custom_call.1} parent=11 // pred_check
          %p264 = pneg %p188
        $region30: #{tpu_custom_call.1} parent=11 // pred_check_branch
          %266 = sbr.rel (%p264) target = $region32
        $region31: #{tpu_custom_call.1} parent=11 // pred_region
          _
        $region32: #{tpu_custom_call.1} parent=11 // pred_fallthru
          _
        // Predicated region
        $region33: #{tpu_custom_call.1} parent=11 // pred_check
          %p267 = pneg %p209
        $region34: #{tpu_custom_call.1} parent=11 // pred_check_branch
          %269 = sbr.rel (%p267) target = $region36
        $region35: #{tpu_custom_call.1} parent=11 // pred_region
          _
        $region36: #{tpu_custom_call.1} parent=11 // pred_fallthru
          _
      $region12: #{tpu_custom_call.1} parent=5 // pred_fallthru
        _
      %p270 = scmp.lt.s32.totalorder %s17, 2
      // Predicated region
      $region37: #{tpu_custom_call.1} parent=5 // pred_check
        %p271 = pneg %p270
      $region38: #{tpu_custom_call.1} parent=5 // pred_check_branch
        %273 = sbr.rel (%p271) target = $region40
      $region39: #{tpu_custom_call.1} parent=5 // pred_region
        // Predicated region
        $region41: #{tpu_custom_call.1} parent=39 // pred_check
          %p274 = pneg %p49
        $region42: #{tpu_custom_call.1} parent=39 // pred_check_branch
          %276 = sbr.rel (%p274) target = $region44
        $region43: #{tpu_custom_call.1} parent=39 // pred_region
          %p277 = scmp.lt.s32.totalorder %s24, 1
          %s278 = scalar_select %p277, %s24, 1
          %s279 = smul.addr %s278, 54
          %s280 = smul.addr %s279, 8
          %s281 = scalar_lea.vmem %s0, %s280
        $region44: #{tpu_custom_call.1} parent=39 // pred_fallthru
          _
        // Predicated region
        $region45: #{tpu_custom_call.1} parent=39 // pred_check
          %p282 = pneg %p77
        $region46: #{tpu_custom_call.1} parent=39 // pred_check_branch
          %284 = sbr.rel (%p282) target = $region48
        $region47: #{tpu_custom_call.1} parent=39 // pred_region
          %s285 = smul.u32 2, %s25
          %p286 = scmp.lt.s32.totalorder %s24, 1
          %s287 = scalar_select %p286, %s24, 1
          %p288 = scmp.lt.s32.totalorder %s285, 1
          %s289 = scalar_select %p288, %s285, 1
          %s290 = smul.addr %s287, 2
          %s291 = sadd.s32 %s289, %s290
          %s292 = smul.addr %s291, 8
          %s293 = scalar_lea.vmem %s1, %s292
          %s294 = smul.u32 2, %s25
        $region48: #{tpu_custom_call.1} parent=39 // pred_fallthru
          _
      $region40: #{tpu_custom_call.1} parent=5 // pred_fallthru
        _
      %p295 = scmp.le.s32.totalorder 1, %s17
      %p296 = scmp.lt.s32.totalorder %s17, 3
      %p297 = pnand %p295, %p296
      %p298 = pneg %p297
      // Predicated region
      $region49: #{tpu_custom_call.1} parent=5 // pred_check
        _
      $region50: #{tpu_custom_call.1} parent=5 // pred_check_branch
        %300 = sbr.rel (%p297) target = $region52
      $region51: #{tpu_custom_call.1} parent=5 // pred_region
        %s301 = ssub.s32 %s17, 1
        %p302 = scmp.lt.s32.totalorder %s26, 1
        %s303 = scalar_select %p302, %s26, 1
        %s304 = smul.addr %s303, 54
        %s305 = smul.addr %s304, 8
        %s306 = scalar_lea.vmem %s0, %s305
        %p307 = pneg %p55
        %p308 = pneg %p52
        %s309 = smul.u32 2, %s27
        %p310 = scmp.lt.s32.totalorder %s26, 1
        %s311 = scalar_select %p310, %s26, 1
        %p312 = scmp.lt.s32.totalorder %s309, 1
        %s313 = scalar_select %p312, %s309, 1
        %s314 = smul.addr %s311, 2
        %s315 = sadd.s32 %s313, %s314
        %s316 = smul.addr %s315, 8
        %s317 = scalar_lea.vmem %s1, %s316
        %p318 = pneg %p83
        %p319 = pneg %p80
        %p320 = pneg %p104
        %p321 = pneg %p101
        %p322 = pneg %p125
        %p323 = pneg %p122
        %p324 = pneg %p146
        %p325 = pneg %p143
        %p326 = pneg %p167
        %p327 = pneg %p164
        %p328 = pneg %p188
        %p329 = pneg %p185
        %p330 = pneg %p209
        %p331 = pneg %p206
        %p332 = pneg %p237
        %p333 = pneg %p234
        %s334 = sand.u32 %s224, 1
        %s335 = scalar_lea.sflag [#allocation3], %s334
        %s336 = sand.u32 %s224, 1
        %s337 = smul.addr %s336, 16
        %s338 = scalar_lea.vmem [#allocation2], %s337
        %p339 = scmp.lt.s32.totalorder %s26, 1
        %s340 = scalar_select %p339, %s26, 1
        %s341 = smul.addr %s340, 54
        %s342 = smul.addr %s341, 8
        %s343 = scalar_lea.vmem %s0, %s342
        %s344 = smul.u32 2, %s27
        %p345 = scmp.lt.s32.totalorder %s26, 1
        %s346 = scalar_select %p345, %s26, 1
        %p347 = scmp.lt.s32.totalorder %s344, 1
        %s348 = scalar_select %p347, %s344, 1
        %s349 = smul.addr %s346, 2
        %s350 = sadd.s32 %s348, %s349
        %s351 = smul.addr %s350, 8
        %s352 = scalar_lea.vmem %s1, %s351
        %s353 = smul.u32 2, %s27
        %s354 = smul.u32 2, %s27
        %s355 = smul.u32 %s27, 16
        %s356 = smul.u32 %s355, 24
        %s357 = scalar_lea.vmem %s343, %s356
        %v358 = vld [vmem:[%s357] sm:$0xff]
        %v359 = vld [vmem:[%s357 + $0x8] sm:$0xff]
        %v360 = vld [vmem:[%s357 + $0x10] sm:$0xff]
        %v361 = vld [vmem:[%s357 + $0x18] sm:$0xff]
        %v362 = vld [vmem:[%s357 + $0x20] sm:$0xff]
        %v363 = vld [vmem:[%s357 + $0x28] sm:$0xff]
        %v364 = vld [vmem:[%s357 + $0x30] sm:$0xff]
        %v365 = vld [vmem:[%s357 + $0x38] sm:$0xff]
        %v366 = vld [vmem:[%s357 + $0x40] sm:$0xff]
        %v367 = vld [vmem:[%s357 + $0x48] sm:$0xff]
        %v368 = vld [vmem:[%s357 + $0x50] sm:$0xff]
        %v369 = vld [vmem:[%s357 + $0x58] sm:$0xff]
        %v370 = vld [vmem:[%s357 + $0x60] sm:$0xff]
        %v371 = vld [vmem:[%s357 + $0x68] sm:$0xff]
        %v372 = vld [vmem:[%s357 + $0x70] sm:$0xff]
        %v373 = vld [vmem:[%s357 + $0x78] sm:$0xff]
        %v374 = vld [vmem:[%s357 + $0x80] sm:$0xff]
        %v375 = vld [vmem:[%s357 + $0x88] sm:$0xff]
        %v376 = vld [vmem:[%s357 + $0x90] sm:$0xff]
        %v377 = vld [vmem:[%s357 + $0x98] sm:$0xff]
        %v378 = vld [vmem:[%s357 + $0xa0] sm:$0xff]
        %v379 = vld [vmem:[%s357 + $0xa8] sm:$0xff]
        %v380 = vld [vmem:[%s357 + $0xb0] sm:$0xff]
        %v381 = vld [vmem:[%s357 + $0xb8] sm:$0xff]
        %v382 = vld [vmem:[%s357 + $0xc0] sm:$0xff]
        %v383 = vld [vmem:[%s357 + $0xc8] sm:$0xff]
        %v384 = vld [vmem:[%s357 + $0xd0] sm:$0xff]
        %v385 = vld [vmem:[%s357 + $0xd8] sm:$0xff]
        %v386 = vld [vmem:[%s357 + $0xe0] sm:$0xff]
        %v387 = vld [vmem:[%s357 + $0xe8] sm:$0xff]
        %v388 = vld [vmem:[%s357 + $0xf0] sm:$0xff]
        %v389 = vld [vmem:[%s357 + $0xf8] sm:$0xff]
        %v390 = vld [vmem:[%s357 + $0x100] sm:$0xff]
        %v391 = vld [vmem:[%s357 + $0x108] sm:$0xff]
        %v392 = vld [vmem:[%s357 + $0x110] sm:$0xff]
        %v393 = vld [vmem:[%s357 + $0x118] sm:$0xff]
        %v394 = vld [vmem:[%s357 + $0x120] sm:$0xff]
        %v395 = vld [vmem:[%s357 + $0x128] sm:$0xff]
        %v396 = vld [vmem:[%s357 + $0x130] sm:$0xff]
        %v397 = vld [vmem:[%s357 + $0x138] sm:$0xff]
        %v398 = vld [vmem:[%s357 + $0x140] sm:$0xff]
        %v399 = vld [vmem:[%s357 + $0x148] sm:$0xff]
        %v400 = vld [vmem:[%s357 + $0x150] sm:$0xff]
        %v401 = vld [vmem:[%s357 + $0x158] sm:$0xff]
        %v402 = vld [vmem:[%s357 + $0x160] sm:$0xff]
        %v403 = vld [vmem:[%s357 + $0x168] sm:$0xff]
        %v404 = vld [vmem:[%s357 + $0x170] sm:$0xff]
        %v405 = vld [vmem:[%s357 + $0x178] sm:$0xff]
        %v406 = vld [vmem:[%s357 + $0x180] sm:$0xff]
        %v407 = vld [vmem:[%s357 + $0x188] sm:$0xff]
        %v408 = vld [vmem:[%s357 + $0x190] sm:$0xff]
        %v409 = vld [vmem:[%s357 + $0x198] sm:$0xff]
        %v410 = vld [vmem:[%s357 + $0x1a0] sm:$0xff]
        %v411 = vld [vmem:[%s357 + $0x1a8] sm:$0xff]
        %v412 = vld [vmem:[%s2] sm:$0xff]
        %v413 = vld [vmem:[%s3] sm:$0x1]
        %v415 = vperm.slane %v413, 0
        %vm417 = vcmask 64512
        %v419 = vsel %vm417, %v358, 0
        %v422 = vsel %vm417, %v359, 0
        %v425 = vsel %vm417, %v360, 0
        %v428 = vsel %vm417, %v361, 0
        %v431 = vsel %vm417, %v362, 0
        %v434 = vsel %vm417, %v363, 0
        %v437 = vsel %vm417, %v364, 0
        %v440 = vsel %vm417, %v365, 0
        %v443 = vsel %vm417, %v366, 0
        %v446 = vsel %vm417, %v367, 0
        %v449 = vsel %vm417, %v368, 0
        %v452 = vsel %vm417, %v369, 0
        %v455 = vsel %vm417, %v370, 0
        %v458 = vsel %vm417, %v371, 0
        %v461 = vsel %vm417, %v372, 0
        %v464 = vsel %vm417, %v373, 0
        %v467 = vsel %vm417, %v374, 0
        %v470 = vsel %vm417, %v375, 0
        %v473 = vsel %vm417, %v376, 0
        %v476 = vsel %vm417, %v377, 0
        %v479 = vsel %vm417, %v378, 0
        %v482 = vsel %vm417, %v379, 0
        %v485 = vsel %vm417, %v380, 0
        %v488 = vsel %vm417, %v381, 0
        %v491 = vsel %vm417, %v382, 0
        %v494 = vsel %vm417, %v383, 0
        %v497 = vsel %vm417, %v384, 0
        %v500 = vsel %vm417, %v385, 0
        %v503 = vsel %vm417, %v386, 0
        %v506 = vsel %vm417, %v387, 0
        %v509 = vsel %vm417, %v388, 0
        %v512 = vsel %vm417, %v389, 0
        %v515 = vsel %vm417, %v390, 0
        %v518 = vsel %vm417, %v391, 0
        %v521 = vsel %vm417, %v392, 0
        %v524 = vsel %vm417, %v393, 0
        %v527 = vsel %vm417, %v394, 0
        %v530 = vsel %vm417, %v395, 0
        %v533 = vsel %vm417, %v396, 0
        %v536 = vsel %vm417, %v397, 0
        %v539 = vsel %vm417, %v398, 0
        %v542 = vsel %vm417, %v399, 0
        %v545 = vsel %vm417, %v400, 0
        %v548 = vsel %vm417, %v401, 0
        %v551 = vsel %vm417, %v402, 0
        %v554 = vsel %vm417, %v403, 0
        %v557 = vsel %vm417, %v404, 0
        %v560 = vsel %vm417, %v405, 0
        %v563 = vsel %vm417, %v406, 0
        %v566 = vsel %vm417, %v407, 0
        %v569 = vsel %vm417, %v408, 0
        %v572 = vsel %vm417, %v409, 0
        %v575 = vsel %vm417, %v410, 0
        %v578 = vsel %vm417, %v411, 0
        %580 = vmatpush.msra.mxu0 0.0
        %581 = vmatpush.msra.mxu0 0.0
        %582 = vmatpush.msra.mxu0 0.0
        %583 = vmatpush.msra.mxu0 0.0
        %584 = vmatpush.msra.mxu0 0.0
        %585 = vmatpush.msra.mxu0 0.0
        %586 = vmatpush.msra.mxu0 0.0
        %587 = vmatpush.msra.mxu0 0.0
        %588 = vmatpush.msra.mxu0 0.0
        %589 = vmatpush.msra.mxu0 0.0
        %590 = vmatpush.msra.mxu0 0.0
        %591 = vmatpush.msra.mxu0 0.0
        %592 = vmatpush.msra.mxu0 0.0
        %593 = vmatpush.msra.mxu0 0.0
        %594 = vmatpush.msra.mxu0 0.0
        %595 = vmatpush.msra.mxu0 %v412
        %596 = vmatmul.f32.gmra.mxu0 %v419
        %v597 = vpop.f32.mrf.mxu0
        %v598 = vadd.f32 %v415, %v597
        %599 = vmatmul.f32.gmra.mxu0 %v422
        %v600 = vpop.f32.mrf.mxu0
        %v601 = vadd.f32 %v415, %v600
        %602 = vmatmul.f32.gmra.mxu0 %v425
        %v603 = vpop.f32.mrf.mxu0
        %v604 = vadd.f32 %v415, %v603
        %605 = vmatmul.f32.gmra.mxu0 %v428
        %v606 = vpop.f32.mrf.mxu0
        %v607 = vadd.f32 %v415, %v606
        %608 = vmatmul.f32.gmra.mxu0 %v431
        %v609 = vpop.f32.mrf.mxu0
        %v610 = vadd.f32 %v415, %v609
        %611 = vmatmul.f32.gmra.mxu0 %v434
        %v612 = vpop.f32.mrf.mxu0
        %v613 = vadd.f32 %v415, %v612
        %614 = vmatmul.f32.gmra.mxu0 %v437
        %v615 = vpop.f32.mrf.mxu0
        %v616 = vadd.f32 %v415, %v615
        %617 = vmatmul.f32.gmra.mxu0 %v440
        %v618 = vpop.f32.mrf.mxu0
        %v619 = vadd.f32 %v415, %v618
        %620 = vmatmul.f32.gmra.mxu0 %v443
        %v621 = vpop.f32.mrf.mxu0
        %v622 = vadd.f32 %v415, %v621
        %623 = vmatmul.f32.gmra.mxu0 %v446
        %v624 = vpop.f32.mrf.mxu0
        %v625 = vadd.f32 %v415, %v624
        %626 = vmatmul.f32.gmra.mxu0 %v449
        %v627 = vpop.f32.mrf.mxu0
        %v628 = vadd.f32 %v415, %v627
        %629 = vmatmul.f32.gmra.mxu0 %v452
        %v630 = vpop.f32.mrf.mxu0
        %v631 = vadd.f32 %v415, %v630
        %632 = vmatmul.f32.gmra.mxu0 %v455
        %v633 = vpop.f32.mrf.mxu0
        %v634 = vadd.f32 %v415, %v633
        %635 = vmatmul.f32.gmra.mxu0 %v458
        %v636 = vpop.f32.mrf.mxu0
        %v637 = vadd.f32 %v415, %v636
        %638 = vmatmul.f32.gmra.mxu0 %v461
        %v639 = vpop.f32.mrf.mxu0
        %v640 = vadd.f32 %v415, %v639
        %641 = vmatmul.f32.gmra.mxu0 %v464
        %v642 = vpop.f32.mrf.mxu0
        %v643 = vadd.f32 %v415, %v642
        %644 = vmatmul.f32.gmra.mxu0 %v467
        %v645 = vpop.f32.mrf.mxu0
        %v646 = vadd.f32 %v415, %v645
        %647 = vmatmul.f32.gmra.mxu0 %v470
        %v648 = vpop.f32.mrf.mxu0
        %v649 = vadd.f32 %v415, %v648
        %650 = vmatmul.f32.gmra.mxu0 %v473
        %v651 = vpop.f32.mrf.mxu0
        %v652 = vadd.f32 %v415, %v651
        %653 = vmatmul.f32.gmra.mxu0 %v476
        %v654 = vpop.f32.mrf.mxu0
        %v655 = vadd.f32 %v415, %v654
        %656 = vmatmul.f32.gmra.mxu0 %v479
        %v657 = vpop.f32.mrf.mxu0
        %v658 = vadd.f32 %v415, %v657
        %659 = vmatmul.f32.gmra.mxu0 %v482
        %v660 = vpop.f32.mrf.mxu0
        %v661 = vadd.f32 %v415, %v660
        %662 = vmatmul.f32.gmra.mxu0 %v485
        %v663 = vpop.f32.mrf.mxu0
        %v664 = vadd.f32 %v415, %v663
        %665 = vmatmul.f32.gmra.mxu0 %v488
        %v666 = vpop.f32.mrf.mxu0
        %v667 = vadd.f32 %v415, %v666
        %668 = vmatmul.f32.gmra.mxu0 %v491
        %v669 = vpop.f32.mrf.mxu0
        %v670 = vadd.f32 %v415, %v669
        %671 = vmatmul.f32.gmra.mxu0 %v494
        %v672 = vpop.f32.mrf.mxu0
        %v673 = vadd.f32 %v415, %v672
        %674 = vmatmul.f32.gmra.mxu0 %v497
        %v675 = vpop.f32.mrf.mxu0
        %v676 = vadd.f32 %v415, %v675
        %677 = vmatmul.f32.gmra.mxu0 %v500
        %v678 = vpop.f32.mrf.mxu0
        %v679 = vadd.f32 %v415, %v678
        %680 = vmatmul.f32.gmra.mxu0 %v503
        %v681 = vpop.f32.mrf.mxu0
        %v682 = vadd.f32 %v415, %v681
        %683 = vmatmul.f32.gmra.mxu0 %v506
        %v684 = vpop.f32.mrf.mxu0
        %v685 = vadd.f32 %v415, %v684
        %686 = vmatmul.f32.gmra.mxu0 %v509
        %v687 = vpop.f32.mrf.mxu0
        %v688 = vadd.f32 %v415, %v687
        %689 = vmatmul.f32.gmra.mxu0 %v512
        %v690 = vpop.f32.mrf.mxu0
        %v691 = vadd.f32 %v415, %v690
        %692 = vmatmul.f32.gmra.mxu0 %v515
        %v693 = vpop.f32.mrf.mxu0
        %v694 = vadd.f32 %v415, %v693
        %695 = vmatmul.f32.gmra.mxu0 %v518
        %v696 = vpop.f32.mrf.mxu0
        %v697 = vadd.f32 %v415, %v696
        %698 = vmatmul.f32.gmra.mxu0 %v521
        %v699 = vpop.f32.mrf.mxu0
        %v700 = vadd.f32 %v415, %v699
        %701 = vmatmul.f32.gmra.mxu0 %v524
        %v702 = vpop.f32.mrf.mxu0
        %v703 = vadd.f32 %v415, %v702
        %704 = vmatmul.f32.gmra.mxu0 %v527
        %v705 = vpop.f32.mrf.mxu0
        %v706 = vadd.f32 %v415, %v705
        %707 = vmatmul.f32.gmra.mxu0 %v530
        %v708 = vpop.f32.mrf.mxu0
        %v709 = vadd.f32 %v415, %v708
        %710 = vmatmul.f32.gmra.mxu0 %v533
        %v711 = vpop.f32.mrf.mxu0
        %v712 = vadd.f32 %v415, %v711
        %713 = vmatmul.f32.gmra.mxu0 %v536
        %v714 = vpop.f32.mrf.mxu0
        %v715 = vadd.f32 %v415, %v714
        %716 = vmatmul.f32.gmra.mxu0 %v539
        %v717 = vpop.f32.mrf.mxu0
        %v718 = vadd.f32 %v415, %v717
        %719 = vmatmul.f32.gmra.mxu0 %v542
        %v720 = vpop.f32.mrf.mxu0
        %v721 = vadd.f32 %v415, %v720
        %722 = vmatmul.f32.gmra.mxu0 %v545
        %v723 = vpop.f32.mrf.mxu0
        %v724 = vadd.f32 %v415, %v723
        %725 = vmatmul.f32.gmra.mxu0 %v548
        %v726 = vpop.f32.mrf.mxu0
        %v727 = vadd.f32 %v415, %v726
        %728 = vmatmul.f32.gmra.mxu0 %v551
        %v729 = vpop.f32.mrf.mxu0
        %v730 = vadd.f32 %v415, %v729
        %731 = vmatmul.f32.gmra.mxu0 %v554
        %v732 = vpop.f32.mrf.mxu0
        %v733 = vadd.f32 %v415, %v732
        %734 = vmatmul.f32.gmra.mxu0 %v557
        %v735 = vpop.f32.mrf.mxu0
        %v736 = vadd.f32 %v415, %v735
        %737 = vmatmul.f32.gmra.mxu0 %v560
        %v738 = vpop.f32.mrf.mxu0
        %v739 = vadd.f32 %v415, %v738
        %740 = vmatmul.f32.gmra.mxu0 %v563
        %v741 = vpop.f32.mrf.mxu0
        %v742 = vadd.f32 %v415, %v741
        %743 = vmatmul.f32.gmra.mxu0 %v566
        %v744 = vpop.f32.mrf.mxu0
        %v745 = vadd.f32 %v415, %v744
        %746 = vmatmul.f32.gmra.mxu0 %v569
        %v747 = vpop.f32.mrf.mxu0
        %v748 = vadd.f32 %v415, %v747
        %749 = vmatmul.f32.gmra.mxu0 %v572
        %v750 = vpop.f32.mrf.mxu0
        %v751 = vadd.f32 %v415, %v750
        %752 = vmatmul.f32.gmra.mxu0 %v575
        %v753 = vpop.f32.mrf.mxu0
        %v754 = vadd.f32 %v415, %v753
        %755 = vmatmul.f32.gmra.mxu0 %v578
        %v756 = vpop.f32.mrf.mxu0
        %v757 = vadd.f32 %v415, %v756
        %758 = vdwg.mxu0
        %v759 = vmax.f32 %v598, 0.0
        %v760 = vmax.f32 %v601, 0.0
        %v761 = vmax.f32 %v604, 0.0
        %v762 = vmax.f32 %v607, 0.0
        %v763 = vmax.f32 %v610, 0.0
        %v764 = vmax.f32 %v613, 0.0
        %v765 = vmax.f32 %v616, 0.0
        %v766 = vmax.f32 %v619, 0.0
        %v767 = vmax.f32 %v622, 0.0
        %v768 = vmax.f32 %v625, 0.0
        %v769 = vmax.f32 %v628, 0.0
        %v770 = vmax.f32 %v631, 0.0
        %v771 = vmax.f32 %v634, 0.0
        %v772 = vmax.f32 %v637, 0.0
        %v773 = vmax.f32 %v640, 0.0
        %v774 = vmax.f32 %v643, 0.0
        %v775 = vmax.f32 %v646, 0.0
        %v776 = vmax.f32 %v649, 0.0
        %v777 = vmax.f32 %v652, 0.0
        %v778 = vmax.f32 %v655, 0.0
        %v779 = vmax.f32 %v658, 0.0
        %v780 = vmax.f32 %v661, 0.0
        %v781 = vmax.f32 %v664, 0.0
        %v782 = vmax.f32 %v667, 0.0
        %v783 = vmax.f32 %v670, 0.0
        %v784 = vmax.f32 %v673, 0.0
        %v785 = vmax.f32 %v676, 0.0
        %v786 = vmax.f32 %v679, 0.0
        %v787 = vmax.f32 %v682, 0.0
        %v788 = vmax.f32 %v685, 0.0
        %v789 = vmax.f32 %v688, 0.0
        %v790 = vmax.f32 %v691, 0.0
        %v791 = vmax.f32 %v694, 0.0
        %v792 = vmax.f32 %v697, 0.0
        %v793 = vmax.f32 %v700, 0.0
        %v794 = vmax.f32 %v703, 0.0
        %v795 = vmax.f32 %v706, 0.0
        %v796 = vmax.f32 %v709, 0.0
        %v797 = vmax.f32 %v712, 0.0
        %v798 = vmax.f32 %v715, 0.0
        %v799 = vmax.f32 %v718, 0.0
        %v800 = vmax.f32 %v721, 0.0
        %v801 = vmax.f32 %v724, 0.0
        %v802 = vmax.f32 %v727, 0.0
        %v803 = vmax.f32 %v730, 0.0
        %v804 = vmax.f32 %v733, 0.0
        %v805 = vmax.f32 %v736, 0.0
        %v806 = vmax.f32 %v739, 0.0
        %v807 = vmax.f32 %v742, 0.0
        %v808 = vmax.f32 %v745, 0.0
        %v809 = vmax.f32 %v748, 0.0
        %v810 = vmax.f32 %v751, 0.0
        %v811 = vmax.f32 %v754, 0.0
        %v812 = vmax.f32 %v757, 0.0
        %v813 = vmin.f32 %v759, 6.0
        %v814 = vmin.f32 %v760, 6.0
        %v815 = vmin.f32 %v761, 6.0
        %v816 = vmin.f32 %v762, 6.0
        %v817 = vmin.f32 %v763, 6.0
        %v818 = vmin.f32 %v764, 6.0
        %v819 = vmin.f32 %v765, 6.0
        %v820 = vmin.f32 %v766, 6.0
        %v821 = vmin.f32 %v767, 6.0
        %v822 = vmin.f32 %v768, 6.0
        %v823 = vmin.f32 %v769, 6.0
        %v824 = vmin.f32 %v770, 6.0
        %v825 = vmin.f32 %v771, 6.0
        %v826 = vmin.f32 %v772, 6.0
        %v827 = vmin.f32 %v773, 6.0
        %v828 = vmin.f32 %v774, 6.0
        %v829 = vmin.f32 %v775, 6.0
        %v830 = vmin.f32 %v776, 6.0
        %v831 = vmin.f32 %v777, 6.0
        %v832 = vmin.f32 %v778, 6.0
        %v833 = vmin.f32 %v779, 6.0
        %v834 = vmin.f32 %v780, 6.0
        %v835 = vmin.f32 %v781, 6.0
        %v836 = vmin.f32 %v782, 6.0
        %v837 = vmin.f32 %v783, 6.0
        %v838 = vmin.f32 %v784, 6.0
        %v839 = vmin.f32 %v785, 6.0
        %v840 = vmin.f32 %v786, 6.0
        %v841 = vmin.f32 %v787, 6.0
        %v842 = vmin.f32 %v788, 6.0
        %v843 = vmin.f32 %v789, 6.0
        %v844 = vmin.f32 %v790, 6.0
        %v845 = vmin.f32 %v791, 6.0
        %v846 = vmin.f32 %v792, 6.0
        %v847 = vmin.f32 %v793, 6.0
        %v848 = vmin.f32 %v794, 6.0
        %v849 = vmin.f32 %v795, 6.0
        %v850 = vmin.f32 %v796, 6.0
        %v851 = vmin.f32 %v797, 6.0
        %v852 = vmin.f32 %v798, 6.0
        %v853 = vmin.f32 %v799, 6.0
        %v854 = vmin.f32 %v800, 6.0
        %v855 = vmin.f32 %v801, 6.0
        %v856 = vmin.f32 %v802, 6.0
        %v857 = vmin.f32 %v803, 6.0
        %v858 = vmin.f32 %v804, 6.0
        %v859 = vmin.f32 %v805, 6.0
        %v860 = vmin.f32 %v806, 6.0
        %v861 = vmin.f32 %v807, 6.0
        %v862 = vmin.f32 %v808, 6.0
        %v863 = vmin.f32 %v809, 6.0
        %v864 = vmin.f32 %v810, 6.0
        %v865 = vmin.f32 %v811, 6.0
        %v866 = vmin.f32 %v812, 6.0
        %v867 = vstv %s355
        %v868 = vadd.s32 %v867, 1
        %v869 = vadd.s32 %v867, 2
        %v870 = vadd.s32 %v867, 3
        %v871 = vadd.s32 %v867, 4
        %v872 = vadd.s32 %v867, 5
        %v873 = vadd.s32 %v867, 6
        %v874 = vadd.s32 %v867, 7
        %v875 = vadd.s32 %v867, 8
        %v876 = vadd.s32 %v867, 9
        %v877 = vadd.s32 %v867, 10
        %v878 = vadd.s32 %v867, 11
        %v879 = vadd.s32 %v867, 12
        %v880 = vadd.s32 %v867, 13
        %v881 = vadd.s32 %v867, 14
        %v882 = vadd.s32 %v867, 15
        %v883 = vadd.s32 %v867, 16
        %v884 = vadd.s32 %v867, 17
        %v885 = vlaneseq
        %v886 = vshrl.u32 %v885, 7
        %v887 = vadd.s32 %v886, 8
        %v888 = vadd.s32 %v886, 16
        %vm889 = vcmp.ge.s32.totalorder %v867, 1
        %vm890 = vcmp.ge.s32.totalorder %v868, 1
        %vm891 = vcmp.ge.s32.totalorder %v869, 1
        %vm892 = vcmp.ge.s32.totalorder %v870, 1
        %vm893 = vcmp.ge.s32.totalorder %v871, 1
        %vm894 = vcmp.ge.s32.totalorder %v872, 1
        %vm895 = vcmp.ge.s32.totalorder %v873, 1
        %vm896 = vcmp.ge.s32.totalorder %v874, 1
        %vm897 = vcmp.ge.s32.totalorder %v875, 1
        %vm898 = vcmp.ge.s32.totalorder %v876, 1
        %vm899 = vcmp.ge.s32.totalorder %v877, 1
        %vm900 = vcmp.ge.s32.totalorder %v878, 1
        %vm901 = vcmp.ge.s32.totalorder %v879, 1
        %vm902 = vcmp.ge.s32.totalorder %v880, 1
        %vm903 = vcmp.ge.s32.totalorder %v881, 1
        %vm904 = vcmp.ge.s32.totalorder %v882, 1
        %vm905 = vcmp.ge.s32.totalorder %v883, 1
        %vm906 = vcmp.ge.s32.totalorder %v884, 1
        %vm907 = vcmp.le.s32.totalorder %v867, 16
        %vm908 = vcmp.le.s32.totalorder %v868, 16
        %vm909 = vcmp.le.s32.totalorder %v869, 16
        %vm910 = vcmp.le.s32.totalorder %v870, 16
        %vm911 = vcmp.le.s32.totalorder %v871, 16
        %vm912 = vcmp.le.s32.totalorder %v872, 16
        %vm913 = vcmp.le.s32.totalorder %v873, 16
        %vm914 = vcmp.le.s32.totalorder %v874, 16
        %vm915 = vcmp.le.s32.totalorder %v875, 16
        %vm916 = vcmp.le.s32.totalorder %v876, 16
        %vm917 = vcmp.le.s32.totalorder %v877, 16
        %vm918 = vcmp.le.s32.totalorder %v878, 16
        %vm919 = vcmp.le.s32.totalorder %v879, 16
        %vm920 = vcmp.le.s32.totalorder %v880, 16
        %vm921 = vcmp.le.s32.totalorder %v881, 16
        %vm922 = vcmp.le.s32.totalorder %v882, 16
        %vm923 = vcmp.le.s32.totalorder %v883, 16
        %vm924 = vcmp.le.s32.totalorder %v884, 16
        %vm925 = vmand %vm889, %vm907
        %vm926 = vmand %vm890, %vm908
        %vm927 = vmand %vm891, %vm909
        %vm928 = vmand %vm892, %vm910
        %vm929 = vmand %vm893, %vm911
        %vm930 = vmand %vm894, %vm912
        %vm931 = vmand %vm895, %vm913
        %vm932 = vmand %vm896, %vm914
        %vm933 = vmand %vm897, %vm915
        %vm934 = vmand %vm898, %vm916
        %vm935 = vmand %vm899, %vm917
        %vm936 = vmand %vm900, %vm918
        %vm937 = vmand %vm901, %vm919
        %vm938 = vmand %vm902, %vm920
        %vm939 = vmand %vm903, %vm921
        %vm940 = vmand %vm904, %vm922
        %vm941 = vmand %vm905, %vm923
        %vm942 = vmand %vm906, %vm924
        %vm943 = vcmp.ge.s32.totalorder %v886, 1
        %vm944 = vcmp.ge.s32.totalorder %v887, 1
        %vm945 = vcmp.ge.s32.totalorder %v888, 1
        %v946 = vsel %vm925, 1, 0
        %v947 = vsel %vm926, 1, 0
        %v948 = vsel %vm927, 1, 0
        %v949 = vsel %vm928, 1, 0
        %v950 = vsel %vm929, 1, 0
        %v951 = vsel %vm930, 1, 0
        %v952 = vsel %vm931, 1, 0
        %v953 = vsel %vm932, 1, 0
        %v954 = vsel %vm933, 1, 0
        %v955 = vsel %vm934, 1, 0
        %v956 = vsel %vm935, 1, 0
        %v957 = vsel %vm936, 1, 0
        %v958 = vsel %vm937, 1, 0
        %v959 = vsel %vm938, 1, 0
        %v960 = vsel %vm939, 1, 0
        %v961 = vsel %vm940, 1, 0
        %v962 = vsel %vm941, 1, 0
        %v963 = vsel %vm942, 1, 0
        %vm964 = vcmp.eq.s32.totalorder %v946, 1
        %vm965 = vcmp.eq.s32.totalorder %v947, 1
        %vm966 = vcmp.eq.s32.totalorder %v948, 1
        %vm967 = vcmp.eq.s32.totalorder %v949, 1
        %vm968 = vcmp.eq.s32.totalorder %v950, 1
        %vm969 = vcmp.eq.s32.totalorder %v951, 1
        %vm970 = vcmp.eq.s32.totalorder %v952, 1
        %vm971 = vcmp.eq.s32.totalorder %v953, 1
        %vm972 = vcmp.eq.s32.totalorder %v954, 1
        %vm973 = vcmp.eq.s32.totalorder %v955, 1
        %vm974 = vcmp.eq.s32.totalorder %v956, 1
        %vm975 = vcmp.eq.s32.totalorder %v957, 1
        %vm976 = vcmp.eq.s32.totalorder %v958, 1
        %vm977 = vcmp.eq.s32.totalorder %v959, 1
        %vm978 = vcmp.eq.s32.totalorder %v960, 1
        %vm979 = vcmp.eq.s32.totalorder %v961, 1
        %vm980 = vcmp.eq.s32.totalorder %v962, 1
        %vm981 = vcmp.eq.s32.totalorder %v963, 1
        %v982 = vsel %vm943, 1, 0
        %v983 = vsel %vm944, 1, 0
        %v984 = vsel %vm945, 1, 0
        %vm985 = vcmp.eq.s32.totalorder %v982, 1
        %vm986 = vcmp.eq.s32.totalorder %v983, 1
        %vm987 = vcmp.eq.s32.totalorder %v984, 1
        %vm988 = vmand %vm964, %vm985
        %vm989 = vmand %vm964, %vm986
        %vm990 = vmand %vm964, %vm987
        %vm991 = vmand %vm965, %vm985
        %vm992 = vmand %vm965, %vm986
        %vm993 = vmand %vm965, %vm987
        %vm994 = vmand %vm966, %vm985
        %vm995 = vmand %vm966, %vm986
        %vm996 = vmand %vm966, %vm987
        %vm997 = vmand %vm967, %vm985
        %vm998 = vmand %vm967, %vm986
        %vm999 = vmand %vm967, %vm987
        %vm1000 = vmand %vm968, %vm985
        %vm1001 = vmand %vm968, %vm986
        %vm1002 = vmand %vm968, %vm987
        %vm1003 = vmand %vm969, %vm985
        %vm1004 = vmand %vm969, %vm986
        %vm1005 = vmand %vm969, %vm987
        %vm1006 = vmand %vm970, %vm985
        %vm1007 = vmand %vm970, %vm986
        %vm1008 = vmand %vm970, %vm987
        %vm1009 = vmand %vm971, %vm985
        %vm1010 = vmand %vm971, %vm986
        %vm1011 = vmand %vm971, %vm987
        %vm1012 = vmand %vm972, %vm985
        %vm1013 = vmand %vm972, %vm986
        %vm1014 = vmand %vm972, %vm987
        %vm1015 = vmand %vm973, %vm985
        %vm1016 = vmand %vm973, %vm986
        %vm1017 = vmand %vm973, %vm987
        %vm1018 = vmand %vm974, %vm985
        %vm1019 = vmand %vm974, %vm986
        %vm1020 = vmand %vm974, %vm987
        %vm1021 = vmand %vm975, %vm985
        %vm1022 = vmand %vm975, %vm986
        %vm1023 = vmand %vm975, %vm987
        %vm1024 = vmand %vm976, %vm985
        %vm1025 = vmand %vm976, %vm986
        %vm1026 = vmand %vm976, %vm987
        %vm1027 = vmand %vm977, %vm985
        %vm1028 = vmand %vm977, %vm986
        %vm1029 = vmand %vm977, %vm987
        %vm1030 = vmand %vm978, %vm985
        %vm1031 = vmand %vm978, %vm986
        %vm1032 = vmand %vm978, %vm987
        %vm1033 = vmand %vm979, %vm985
        %vm1034 = vmand %vm979, %vm986
        %vm1035 = vmand %vm979, %vm987
        %vm1036 = vmand %vm980, %vm985
        %vm1037 = vmand %vm980, %vm986
        %vm1038 = vmand %vm980, %vm987
        %vm1039 = vmand %vm981, %vm985
        %vm1040 = vmand %vm981, %vm986
        %vm1041 = vmand %vm981, %vm987
        %vm1042 = vcmp.le.s32.totalorder %v886, 16
        %vm1043 = vcmp.le.s32.totalorder %v887, 16
        %vm1044 = vcmp.le.s32.totalorder %v888, 16
        %v1045 = vsel %vm1042, 1, 0
        %v1046 = vsel %vm1043, 1, 0
        %v1047 = vsel %vm1044, 1, 0
        %vm1048 = vcmp.eq.s32.totalorder %v1045, 1
        %vm1049 = vcmp.eq.s32.totalorder %v1046, 1
        %vm1050 = vcmp.eq.s32.totalorder %v1047, 1
        %vm1051 = vmand %vm988, %vm1048
        %vm1052 = vmand %vm989, %vm1049
        %vm1053 = vmand %vm990, %vm1050
        %vm1054 = vmand %vm991, %vm1048
        %vm1055 = vmand %vm992, %vm1049
        %vm1056 = vmand %vm993, %vm1050
        %vm1057 = vmand %vm994, %vm1048
        %vm1058 = vmand %vm995, %vm1049
        %vm1059 = vmand %vm996, %vm1050
        %vm1060 = vmand %vm997, %vm1048
        %vm1061 = vmand %vm998, %vm1049
        %vm1062 = vmand %vm999, %vm1050
        %vm1063 = vmand %vm1000, %vm1048
        %vm1064 = vmand %vm1001, %vm1049
        %vm1065 = vmand %vm1002, %vm1050
        %vm1066 = vmand %vm1003, %vm1048
        %vm1067 = vmand %vm1004, %vm1049
        %vm1068 = vmand %vm1005, %vm1050
        %vm1069 = vmand %vm1006, %vm1048
        %vm1070 = vmand %vm1007, %vm1049
        %vm1071 = vmand %vm1008, %vm1050
        %vm1072 = vmand %vm1009, %vm1048
        %vm1073 = vmand %vm1010, %vm1049
        %vm1074 = vmand %vm1011, %vm1050
        %vm1075 = vmand %vm1012, %vm1048
        %vm1076 = vmand %vm1013, %vm1049
        %vm1077 = vmand %vm1014, %vm1050
        %vm1078 = vmand %vm1015, %vm1048
        %vm1079 = vmand %vm1016, %vm1049
        %vm1080 = vmand %vm1017, %vm1050
        %vm1081 = vmand %vm1018, %vm1048
        %vm1082 = vmand %vm1019, %vm1049
        %vm1083 = vmand %vm1020, %vm1050
        %vm1084 = vmand %vm1021, %vm1048
        %vm1085 = vmand %vm1022, %vm1049
        %vm1086 = vmand %vm1023, %vm1050
        %vm1087 = vmand %vm1024, %vm1048
        %vm1088 = vmand %vm1025, %vm1049
        %vm1089 = vmand %vm1026, %vm1050
        %vm1090 = vmand %vm1027, %vm1048
        %vm1091 = vmand %vm1028, %vm1049
        %vm1092 = vmand %vm1029, %vm1050
        %vm1093 = vmand %vm1030, %vm1048
        %vm1094 = vmand %vm1031, %vm1049
        %vm1095 = vmand %vm1032, %vm1050
        %vm1096 = vmand %vm1033, %vm1048
        %vm1097 = vmand %vm1034, %vm1049
        %vm1098 = vmand %vm1035, %vm1050
        %vm1099 = vmand %vm1036, %vm1048
        %vm1100 = vmand %vm1037, %vm1049
        %vm1101 = vmand %vm1038, %vm1050
        %vm1102 = vmand %vm1039, %vm1048
        %vm1103 = vmand %vm1040, %vm1049
        %vm1104 = vmand %vm1041, %vm1050
        %v1105 = vsel %vm1051, 1, 0
        %v1106 = vsel %vm1052, 1, 0
        %v1107 = vsel %vm1053, 1, 0
        %v1108 = vsel %vm1054, 1, 0
        %v1109 = vsel %vm1055, 1, 0
        %v1110 = vsel %vm1056, 1, 0
        %v1111 = vsel %vm1057, 1, 0
        %v1112 = vsel %vm1058, 1, 0
        %v1113 = vsel %vm1059, 1, 0
        %v1114 = vsel %vm1060, 1, 0
        %v1115 = vsel %vm1061, 1, 0
        %v1116 = vsel %vm1062, 1, 0
        %v1117 = vsel %vm1063, 1, 0
        %v1118 = vsel %vm1064, 1, 0
        %v1119 = vsel %vm1065, 1, 0
        %v1120 = vsel %vm1066, 1, 0
        %v1121 = vsel %vm1067, 1, 0
        %v1122 = vsel %vm1068, 1, 0
        %v1123 = vsel %vm1069, 1, 0
        %v1124 = vsel %vm1070, 1, 0
        %v1125 = vsel %vm1071, 1, 0
        %v1126 = vsel %vm1072, 1, 0
        %v1127 = vsel %vm1073, 1, 0
        %v1128 = vsel %vm1074, 1, 0
        %v1129 = vsel %vm1075, 1, 0
        %v1130 = vsel %vm1076, 1, 0
        %v1131 = vsel %vm1077, 1, 0
        %v1132 = vsel %vm1078, 1, 0
        %v1133 = vsel %vm1079, 1, 0
        %v1134 = vsel %vm1080, 1, 0
        %v1135 = vsel %vm1081, 1, 0
        %v1136 = vsel %vm1082, 1, 0
        %v1137 = vsel %vm1083, 1, 0
        %v1138 = vsel %vm1084, 1, 0
        %v1139 = vsel %vm1085, 1, 0
        %v1140 = vsel %vm1086, 1, 0
        %v1141 = vsel %vm1087, 1, 0
        %v1142 = vsel %vm1088, 1, 0
        %v1143 = vsel %vm1089, 1, 0
        %v1144 = vsel %vm1090, 1, 0
        %v1145 = vsel %vm1091, 1, 0
        %v1146 = vsel %vm1092, 1, 0
        %v1147 = vsel %vm1093, 1, 0
        %v1148 = vsel %vm1094, 1, 0
        %v1149 = vsel %vm1095, 1, 0
        %v1150 = vsel %vm1096, 1, 0
        %v1151 = vsel %vm1097, 1, 0
        %v1152 = vsel %vm1098, 1, 0
        %v1153 = vsel %vm1099, 1, 0
        %v1154 = vsel %vm1100, 1, 0
        %v1155 = vsel %vm1101, 1, 0
        %v1156 = vsel %vm1102, 1, 0
        %v1157 = vsel %vm1103, 1, 0
        %v1158 = vsel %vm1104, 1, 0
        %vm1159 = vcmp.eq.s32.totalorder %v1105, 1
        %vm1160 = vcmp.eq.s32.totalorder %v1106, 1
        %vm1161 = vcmp.eq.s32.totalorder %v1107, 1
        %vm1162 = vcmp.eq.s32.totalorder %v1108, 1
        %vm1163 = vcmp.eq.s32.totalorder %v1109, 1
        %vm1164 = vcmp.eq.s32.totalorder %v1110, 1
        %vm1165 = vcmp.eq.s32.totalorder %v1111, 1
        %vm1166 = vcmp.eq.s32.totalorder %v1112, 1
        %vm1167 = vcmp.eq.s32.totalorder %v1113, 1
        %vm1168 = vcmp.eq.s32.totalorder %v1114, 1
        %vm1169 = vcmp.eq.s32.totalorder %v1115, 1
        %vm1170 = vcmp.eq.s32.totalorder %v1116, 1
        %vm1171 = vcmp.eq.s32.totalorder %v1117, 1
        %vm1172 = vcmp.eq.s32.totalorder %v1118, 1
        %vm1173 = vcmp.eq.s32.totalorder %v1119, 1
        %vm1174 = vcmp.eq.s32.totalorder %v1120, 1
        %vm1175 = vcmp.eq.s32.totalorder %v1121, 1
        %vm1176 = vcmp.eq.s32.totalorder %v1122, 1
        %vm1177 = vcmp.eq.s32.totalorder %v1123, 1
        %vm1178 = vcmp.eq.s32.totalorder %v1124, 1
        %vm1179 = vcmp.eq.s32.totalorder %v1125, 1
        %vm1180 = vcmp.eq.s32.totalorder %v1126, 1
        %vm1181 = vcmp.eq.s32.totalorder %v1127, 1
        %vm1182 = vcmp.eq.s32.totalorder %v1128, 1
        %vm1183 = vcmp.eq.s32.totalorder %v1129, 1
        %vm1184 = vcmp.eq.s32.totalorder %v1130, 1
        %vm1185 = vcmp.eq.s32.totalorder %v1131, 1
        %vm1186 = vcmp.eq.s32.totalorder %v1132, 1
        %vm1187 = vcmp.eq.s32.totalorder %v1133, 1
        %vm1188 = vcmp.eq.s32.totalorder %v1134, 1
        %vm1189 = vcmp.eq.s32.totalorder %v1135, 1
        %vm1190 = vcmp.eq.s32.totalorder %v1136, 1
        %vm1191 = vcmp.eq.s32.totalorder %v1137, 1
        %vm1192 = vcmp.eq.s32.totalorder %v1138, 1
        %vm1193 = vcmp.eq.s32.totalorder %v1139, 1
        %vm1194 = vcmp.eq.s32.totalorder %v1140, 1
        %vm1195 = vcmp.eq.s32.totalorder %v1141, 1
        %vm1196 = vcmp.eq.s32.totalorder %v1142, 1
        %vm1197 = vcmp.eq.s32.totalorder %v1143, 1
        %vm1198 = vcmp.eq.s32.totalorder %v1144, 1
        %vm1199 = vcmp.eq.s32.totalorder %v1145, 1
        %vm1200 = vcmp.eq.s32.totalorder %v1146, 1
        %vm1201 = vcmp.eq.s32.totalorder %v1147, 1
        %vm1202 = vcmp.eq.s32.totalorder %v1148, 1
        %vm1203 = vcmp.eq.s32.totalorder %v1149, 1
        %vm1204 = vcmp.eq.s32.totalorder %v1150, 1
        %vm1205 = vcmp.eq.s32.totalorder %v1151, 1
        %vm1206 = vcmp.eq.s32.totalorder %v1152, 1
        %vm1207 = vcmp.eq.s32.totalorder %v1153, 1
        %vm1208 = vcmp.eq.s32.totalorder %v1154, 1
        %vm1209 = vcmp.eq.s32.totalorder %v1155, 1
        %vm1210 = vcmp.eq.s32.totalorder %v1156, 1
        %vm1211 = vcmp.eq.s32.totalorder %v1157, 1
        %vm1212 = vcmp.eq.s32.totalorder %v1158, 1
        %v1213 = vsel %vm1159, %v813, 0.0
        %v1214 = vsel %vm1160, %v814, 0.0
        %v1215 = vsel %vm1161, %v815, 0.0
        %v1216 = vsel %vm1162, %v816, 0.0
        %v1217 = vsel %vm1163, %v817, 0.0
        %v1218 = vsel %vm1164, %v818, 0.0
        %v1219 = vsel %vm1165, %v819, 0.0
        %v1220 = vsel %vm1166, %v820, 0.0
        %v1221 = vsel %vm1167, %v821, 0.0
        %v1222 = vsel %vm1168, %v822, 0.0
        %v1223 = vsel %vm1169, %v823, 0.0
        %v1224 = vsel %vm1170, %v824, 0.0
        %v1225 = vsel %vm1171, %v825, 0.0
        %v1226 = vsel %vm1172, %v826, 0.0
        %v1227 = vsel %vm1173, %v827, 0.0
        %v1228 = vsel %vm1174, %v828, 0.0
        %v1229 = vsel %vm1175, %v829, 0.0
        %v1230 = vsel %vm1176, %v830, 0.0
        %v1231 = vsel %vm1177, %v831, 0.0
        %v1232 = vsel %vm1178, %v832, 0.0
        %v1233 = vsel %vm1179, %v833, 0.0
        %v1234 = vsel %vm1180, %v834, 0.0
        %v1235 = vsel %vm1181, %v835, 0.0
        %v1236 = vsel %vm1182, %v836, 0.0
        %v1237 = vsel %vm1183, %v837, 0.0
        %v1238 = vsel %vm1184, %v838, 0.0
        %v1239 = vsel %vm1185, %v839, 0.0
        %v1240 = vsel %vm1186, %v840, 0.0
        %v1241 = vsel %vm1187, %v841, 0.0
        %v1242 = vsel %vm1188, %v842, 0.0
        %v1243 = vsel %vm1189, %v843, 0.0
        %v1244 = vsel %vm1190, %v844, 0.0
        %v1245 = vsel %vm1191, %v845, 0.0
        %v1246 = vsel %vm1192, %v846, 0.0
        %v1247 = vsel %vm1193, %v847, 0.0
        %v1248 = vsel %vm1194, %v848, 0.0
        %v1249 = vsel %vm1195, %v849, 0.0
        %v1250 = vsel %vm1196, %v850, 0.0
        %v1251 = vsel %vm1197, %v851, 0.0
        %v1252 = vsel %vm1198, %v852, 0.0
        %v1253 = vsel %vm1199, %v853, 0.0
        %v1254 = vsel %vm1200, %v854, 0.0
        %v1255 = vsel %vm1201, %v855, 0.0
        %v1256 = vsel %vm1202, %v856, 0.0
        %v1257 = vsel %vm1203, %v857, 0.0
        %v1258 = vsel %vm1204, %v858, 0.0
        %v1259 = vsel %vm1205, %v859, 0.0
        %v1260 = vsel %vm1206, %v860, 0.0
        %v1261 = vsel %vm1207, %v861, 0.0
        %v1262 = vsel %vm1208, %v862, 0.0
        %v1263 = vsel %vm1209, %v863, 0.0
        %v1264 = vsel %vm1210, %v864, 0.0
        %v1265 = vsel %vm1211, %v865, 0.0
        %v1266 = vsel %vm1212, %v866, 0.0
        %v1267 = vld [vmem:[%s4] sm:$0x7]
        %v1268 = vld [vmem:[%s4 + $0x4] sm:$0x7]
        %v1269 = vld [vmem:[%s4 + $0x8] sm:$0x7]
        %v1270 = vperm.slane %v1267, 0
        %v1271 = vmul.f32 %v1213, %v1270
        %v1272 = vmul.f32 %v1214, %v1270
        %v1273 = vmul.f32 %v1216, %v1270
        %v1274 = vmul.f32 %v1217, %v1270
        %v1275 = vmul.f32 %v1219, %v1270
        %v1276 = vmul.f32 %v1220, %v1270
        %v1277 = vmul.f32 %v1222, %v1270
        %v1278 = vmul.f32 %v1223, %v1270
        %v1279 = vmul.f32 %v1225, %v1270
        %v1280 = vmul.f32 %v1226, %v1270
        %v1281 = vmul.f32 %v1228, %v1270
        %v1282 = vmul.f32 %v1229, %v1270
        %v1283 = vmul.f32 %v1231, %v1270
        %v1284 = vmul.f32 %v1232, %v1270
        %v1285 = vmul.f32 %v1234, %v1270
        %v1286 = vmul.f32 %v1235, %v1270
        %v1287 = vmul.f32 %v1237, %v1270
        %v1288 = vmul.f32 %v1238, %v1270
        %v1289 = vmul.f32 %v1240, %v1270
        %v1290 = vmul.f32 %v1241, %v1270
        %v1291 = vmul.f32 %v1243, %v1270
        %v1292 = vmul.f32 %v1244, %v1270
        %v1293 = vmul.f32 %v1246, %v1270
        %v1294 = vmul.f32 %v1247, %v1270
        %v1295 = vmul.f32 %v1249, %v1270
        %v1296 = vmul.f32 %v1250, %v1270
        %v1297 = vmul.f32 %v1252, %v1270
        %v1298 = vmul.f32 %v1253, %v1270
        %v1299 = vmul.f32 %v1255, %v1270
        %v1300 = vmul.f32 %v1256, %v1270
        %v1301 = vmul.f32 %v1258, %v1270
        %v1302 = vmul.f32 %v1259, %v1270
        %v1303 = vadd.f32 %v1271, 0.0
        %v1304 = vadd.f32 %v1272, 0.0
        %v1305 = vadd.f32 %v1273, 0.0
        %v1306 = vadd.f32 %v1274, 0.0
        %v1307 = vadd.f32 %v1275, 0.0
        %v1308 = vadd.f32 %v1276, 0.0
        %v1309 = vadd.f32 %v1277, 0.0
        %v1310 = vadd.f32 %v1278, 0.0
        %v1311 = vadd.f32 %v1279, 0.0
        %v1312 = vadd.f32 %v1280, 0.0
        %v1313 = vadd.f32 %v1281, 0.0
        %v1314 = vadd.f32 %v1282, 0.0
        %v1315 = vadd.f32 %v1283, 0.0
        %v1316 = vadd.f32 %v1284, 0.0
        %v1317 = vadd.f32 %v1285, 0.0
        %v1318 = vadd.f32 %v1286, 0.0
        %v1319 = vadd.f32 %v1287, 0.0
        %v1320 = vadd.f32 %v1288, 0.0
        %v1321 = vadd.f32 %v1289, 0.0
        %v1322 = vadd.f32 %v1290, 0.0
        %v1323 = vadd.f32 %v1291, 0.0
        %v1324 = vadd.f32 %v1292, 0.0
        %v1325 = vadd.f32 %v1293, 0.0
        %v1326 = vadd.f32 %v1294, 0.0
        %v1327 = vadd.f32 %v1295, 0.0
        %v1328 = vadd.f32 %v1296, 0.0
        %v1329 = vadd.f32 %v1297, 0.0
        %v1330 = vadd.f32 %v1298, 0.0
        %v1331 = vadd.f32 %v1299, 0.0
        %v1332 = vadd.f32 %v1300, 0.0
        %v1333 = vadd.f32 %v1301, 0.0
        %v1334 = vadd.f32 %v1302, 0.0
        %v1335 = vperm.slane %v1267, 1
        %v1336 = vmul.f32 %v1213, %v1335
        %v1337 = vmul.f32 %v1214, %v1335
        %v1338 = vmul.f32 %v1215, %v1335
        %v1339 = vmul.f32 %v1216, %v1335
        %v1340 = vmul.f32 %v1217, %v1335
        %v1341 = vmul.f32 %v1218, %v1335
        %v1342 = vmul.f32 %v1219, %v1335
        %v1343 = vmul.f32 %v1220, %v1335
        %v1344 = vmul.f32 %v1221, %v1335
        %v1345 = vmul.f32 %v1222, %v1335
        %v1346 = vmul.f32 %v1223, %v1335
        %v1347 = vmul.f32 %v1224, %v1335
        %v1348 = vmul.f32 %v1225, %v1335
        %v1349 = vmul.f32 %v1226, %v1335
        %v1350 = vmul.f32 %v1227, %v1335
        %v1351 = vmul.f32 %v1228, %v1335
        %v1352 = vmul.f32 %v1229, %v1335
        %v1353 = vmul.f32 %v1230, %v1335
        %v1354 = vmul.f32 %v1231, %v1335
        %v1355 = vmul.f32 %v1232, %v1335
        %v1356 = vmul.f32 %v1233, %v1335
        %v1357 = vmul.f32 %v1234, %v1335
        %v1358 = vmul.f32 %v1235, %v1335
        %v1359 = vmul.f32 %v1236, %v1335
        %v1360 = vmul.f32 %v1237, %v1335
        %v1361 = vmul.f32 %v1238, %v1335
        %v1362 = vmul.f32 %v1239, %v1335
        %v1363 = vmul.f32 %v1240, %v1335
        %v1364 = vmul.f32 %v1241, %v1335
        %v1365 = vmul.f32 %v1242, %v1335
        %v1366 = vmul.f32 %v1243, %v1335
        %v1367 = vmul.f32 %v1244, %v1335
        %v1368 = vmul.f32 %v1245, %v1335
        %v1369 = vmul.f32 %v1246, %v1335
        %v1370 = vmul.f32 %v1247, %v1335
        %v1371 = vmul.f32 %v1248, %v1335
        %v1372 = vmul.f32 %v1249, %v1335
        %v1373 = vmul.f32 %v1250, %v1335
        %v1374 = vmul.f32 %v1251, %v1335
        %v1375 = vmul.f32 %v1252, %v1335
        %v1376 = vmul.f32 %v1253, %v1335
        %v1377 = vmul.f32 %v1254, %v1335
        %v1378 = vmul.f32 %v1255, %v1335
        %v1379 = vmul.f32 %v1256, %v1335
        %v1380 = vmul.f32 %v1257, %v1335
        %v1381 = vmul.f32 %v1258, %v1335
        %v1382 = vmul.f32 %v1259, %v1335
        %v1383 = vmul.f32 %v1260, %v1335
        %vm1432 = vcmask 1046528
        %v1433 = vrot.slane %v1336, 1
        %v1434 = vrot.slane %v1337, 1
        %v1435 = vsel %vm1432, %v1433, %v1434
        %v1436 = vrot.slane %v1338, 1
        %v1437 = vsel %vm1432, %v1434, %v1436
        %v1438 = vrot.slane %v1339, 1
        %v1439 = vrot.slane %v1340, 1
        %v1440 = vsel %vm1432, %v1438, %v1439
        %v1441 = vrot.slane %v1341, 1
        %v1442 = vsel %vm1432, %v1439, %v1441
        %v1443 = vrot.slane %v1342, 1
        %v1444 = vrot.slane %v1343, 1
        %v1445 = vsel %vm1432, %v1443, %v1444
        %v1446 = vrot.slane %v1344, 1
        %v1447 = vsel %vm1432, %v1444, %v1446
        %v1448 = vrot.slane %v1345, 1
        %v1449 = vrot.slane %v1346, 1
        %v1450 = vsel %vm1432, %v1448, %v1449
        %v1451 = vrot.slane %v1347, 1
        %v1452 = vsel %vm1432, %v1449, %v1451
        %v1453 = vrot.slane %v1348, 1
        %v1454 = vrot.slane %v1349, 1
        %v1455 = vsel %vm1432, %v1453, %v1454
        %v1456 = vrot.slane %v1350, 1
        %v1457 = vsel %vm1432, %v1454, %v1456
        %v1458 = vrot.slane %v1351, 1
        %v1459 = vrot.slane %v1352, 1
        %v1460 = vsel %vm1432, %v1458, %v1459
        %v1461 = vrot.slane %v1353, 1
        %v1462 = vsel %vm1432, %v1459, %v1461
        %v1463 = vrot.slane %v1354, 1
        %v1464 = vrot.slane %v1355, 1
        %v1465 = vsel %vm1432, %v1463, %v1464
        %v1466 = vrot.slane %v1356, 1
        %v1467 = vsel %vm1432, %v1464, %v1466
        %v1468 = vrot.slane %v1357, 1
        %v1469 = vrot.slane %v1358, 1
        %v1470 = vsel %vm1432, %v1468, %v1469
        %v1471 = vrot.slane %v1359, 1
        %v1472 = vsel %vm1432, %v1469, %v1471
        %v1473 = vrot.slane %v1360, 1
        %v1474 = vrot.slane %v1361, 1
        %v1475 = vsel %vm1432, %v1473, %v1474
        %v1476 = vrot.slane %v1362, 1
        %v1477 = vsel %vm1432, %v1474, %v1476
        %v1478 = vrot.slane %v1363, 1
        %v1479 = vrot.slane %v1364, 1
        %v1480 = vsel %vm1432, %v1478, %v1479
        %v1481 = vrot.slane %v1365, 1
        %v1482 = vsel %vm1432, %v1479, %v1481
        %v1483 = vrot.slane %v1366, 1
        %v1484 = vrot.slane %v1367, 1
        %v1485 = vsel %vm1432, %v1483, %v1484
        %v1486 = vrot.slane %v1368, 1
        %v1487 = vsel %vm1432, %v1484, %v1486
        %v1488 = vrot.slane %v1369, 1
        %v1489 = vrot.slane %v1370, 1
        %v1490 = vsel %vm1432, %v1488, %v1489
        %v1491 = vrot.slane %v1371, 1
        %v1492 = vsel %vm1432, %v1489, %v1491
        %v1493 = vrot.slane %v1372, 1
        %v1494 = vrot.slane %v1373, 1
        %v1495 = vsel %vm1432, %v1493, %v1494
        %v1496 = vrot.slane %v1374, 1
        %v1497 = vsel %vm1432, %v1494, %v1496
        %v1498 = vrot.slane %v1375, 1
        %v1499 = vrot.slane %v1376, 1
        %v1500 = vsel %vm1432, %v1498, %v1499
        %v1501 = vrot.slane %v1377, 1
        %v1502 = vsel %vm1432, %v1499, %v1501
        %v1503 = vrot.slane %v1378, 1
        %v1504 = vrot.slane %v1379, 1
        %v1505 = vsel %vm1432, %v1503, %v1504
        %v1506 = vrot.slane %v1380, 1
        %v1507 = vsel %vm1432, %v1504, %v1506
        %v1508 = vrot.slane %v1381, 1
        %v1509 = vrot.slane %v1382, 1
        %v1510 = vsel %vm1432, %v1508, %v1509
        %v1511 = vrot.slane %v1383, 1
        %v1512 = vsel %vm1432, %v1509, %v1511
        %v1545 = vadd.f32 %v1303, %v1435
        %v1546 = vadd.f32 %v1304, %v1437
        %v1547 = vadd.f32 %v1305, %v1440
        %v1548 = vadd.f32 %v1306, %v1442
        %v1549 = vadd.f32 %v1307, %v1445
        %v1550 = vadd.f32 %v1308, %v1447
        %v1551 = vadd.f32 %v1309, %v1450
        %v1552 = vadd.f32 %v1310, %v1452
        %v1553 = vadd.f32 %v1311, %v1455
        %v1554 = vadd.f32 %v1312, %v1457
        %v1555 = vadd.f32 %v1313, %v1460
        %v1556 = vadd.f32 %v1314, %v1462
        %v1557 = vadd.f32 %v1315, %v1465
        %v1558 = vadd.f32 %v1316, %v1467
        %v1559 = vadd.f32 %v1317, %v1470
        %v1560 = vadd.f32 %v1318, %v1472
        %v1561 = vadd.f32 %v1319, %v1475
        %v1562 = vadd.f32 %v1320, %v1477
        %v1563 = vadd.f32 %v1321, %v1480
        %v1564 = vadd.f32 %v1322, %v1482
        %v1565 = vadd.f32 %v1323, %v1485
        %v1566 = vadd.f32 %v1324, %v1487
        %v1567 = vadd.f32 %v1325, %v1490
        %v1568 = vadd.f32 %v1326, %v1492
        %v1569 = vadd.f32 %v1327, %v1495
        %v1570 = vadd.f32 %v1328, %v1497
        %v1571 = vadd.f32 %v1329, %v1500
        %v1572 = vadd.f32 %v1330, %v1502
        %v1573 = vadd.f32 %v1331, %v1505
        %v1574 = vadd.f32 %v1332, %v1507
        %v1575 = vadd.f32 %v1333, %v1510
        %v1576 = vadd.f32 %v1334, %v1512
        %v1577 = vperm.slane %v1267, 2
        %v1578 = vmul.f32 %v1213, %v1577
        %v1579 = vmul.f32 %v1214, %v1577
        %v1580 = vmul.f32 %v1215, %v1577
        %v1581 = vmul.f32 %v1216, %v1577
        %v1582 = vmul.f32 %v1217, %v1577
        %v1583 = vmul.f32 %v1218, %v1577
        %v1584 = vmul.f32 %v1219, %v1577
        %v1585 = vmul.f32 %v1220, %v1577
        %v1586 = vmul.f32 %v1221, %v1577
        %v1587 = vmul.f32 %v1222, %v1577
        %v1588 = vmul.f32 %v1223, %v1577
        %v1589 = vmul.f32 %v1224, %v1577
        %v1590 = vmul.f32 %v1225, %v1577
        %v1591 = vmul.f32 %v1226, %v1577
        %v1592 = vmul.f32 %v1227, %v1577
        %v1593 = vmul.f32 %v1228, %v1577
        %v1594 = vmul.f32 %v1229, %v1577
        %v1595 = vmul.f32 %v1230, %v1577
        %v1596 = vmul.f32 %v1231, %v1577
        %v1597 = vmul.f32 %v1232, %v1577
        %v1598 = vmul.f32 %v1233, %v1577
        %v1599 = vmul.f32 %v1234, %v1577
        %v1600 = vmul.f32 %v1235, %v1577
        %v1601 = vmul.f32 %v1236, %v1577
        %v1602 = vmul.f32 %v1237, %v1577
        %v1603 = vmul.f32 %v1238, %v1577
        %v1604 = vmul.f32 %v1239, %v1577
        %v1605 = vmul.f32 %v1240, %v1577
        %v1606 = vmul.f32 %v1241, %v1577
        %v1607 = vmul.f32 %v1242, %v1577
        %v1608 = vmul.f32 %v1243, %v1577
        %v1609 = vmul.f32 %v1244, %v1577
        %v1610 = vmul.f32 %v1245, %v1577
        %v1611 = vmul.f32 %v1246, %v1577
        %v1612 = vmul.f32 %v1247, %v1577
        %v1613 = vmul.f32 %v1248, %v1577
        %v1614 = vmul.f32 %v1249, %v1577
        %v1615 = vmul.f32 %v1250, %v1577
        %v1616 = vmul.f32 %v1251, %v1577
        %v1617 = vmul.f32 %v1252, %v1577
        %v1618 = vmul.f32 %v1253, %v1577
        %v1619 = vmul.f32 %v1254, %v1577
        %v1620 = vmul.f32 %v1255, %v1577
        %v1621 = vmul.f32 %v1256, %v1577
        %v1622 = vmul.f32 %v1257, %v1577
        %v1623 = vmul.f32 %v1258, %v1577
        %v1624 = vmul.f32 %v1259, %v1577
        %v1625 = vmul.f32 %v1260, %v1577
        %vm1674 = vcmask 1045504
        %v1675 = vrot.slane %v1578, 2
        %v1676 = vrot.slane %v1579, 2
        %v1677 = vsel %vm1674, %v1675, %v1676
        %v1678 = vrot.slane %v1580, 2
        %v1679 = vsel %vm1674, %v1676, %v1678
        %v1680 = vrot.slane %v1581, 2
        %v1681 = vrot.slane %v1582, 2
        %v1682 = vsel %vm1674, %v1680, %v1681
        %v1683 = vrot.slane %v1583, 2
        %v1684 = vsel %vm1674, %v1681, %v1683
        %v1685 = vrot.slane %v1584, 2
        %v1686 = vrot.slane %v1585, 2
        %v1687 = vsel %vm1674, %v1685, %v1686
        %v1688 = vrot.slane %v1586, 2
        %v1689 = vsel %vm1674, %v1686, %v1688
        %v1690 = vrot.slane %v1587, 2
        %v1691 = vrot.slane %v1588, 2
        %v1692 = vsel %vm1674, %v1690, %v1691
        %v1693 = vrot.slane %v1589, 2
        %v1694 = vsel %vm1674, %v1691, %v1693
        %v1695 = vrot.slane %v1590, 2
        %v1696 = vrot.slane %v1591, 2
        %v1697 = vsel %vm1674, %v1695, %v1696
        %v1698 = vrot.slane %v1592, 2
        %v1699 = vsel %vm1674, %v1696, %v1698
        %v1700 = vrot.slane %v1593, 2
        %v1701 = vrot.slane %v1594, 2
        %v1702 = vsel %vm1674, %v1700, %v1701
        %v1703 = vrot.slane %v1595, 2
        %v1704 = vsel %vm1674, %v1701, %v1703
        %v1705 = vrot.slane %v1596, 2
        %v1706 = vrot.slane %v1597, 2
        %v1707 = vsel %vm1674, %v1705, %v1706
        %v1708 = vrot.slane %v1598, 2
        %v1709 = vsel %vm1674, %v1706, %v1708
        %v1710 = vrot.slane %v1599, 2
        %v1711 = vrot.slane %v1600, 2
        %v1712 = vsel %vm1674, %v1710, %v1711
        %v1713 = vrot.slane %v1601, 2
        %v1714 = vsel %vm1674, %v1711, %v1713
        %v1715 = vrot.slane %v1602, 2
        %v1716 = vrot.slane %v1603, 2
        %v1717 = vsel %vm1674, %v1715, %v1716
        %v1718 = vrot.slane %v1604, 2
        %v1719 = vsel %vm1674, %v1716, %v1718
        %v1720 = vrot.slane %v1605, 2
        %v1721 = vrot.slane %v1606, 2
        %v1722 = vsel %vm1674, %v1720, %v1721
        %v1723 = vrot.slane %v1607, 2
        %v1724 = vsel %vm1674, %v1721, %v1723
        %v1725 = vrot.slane %v1608, 2
        %v1726 = vrot.slane %v1609, 2
        %v1727 = vsel %vm1674, %v1725, %v1726
        %v1728 = vrot.slane %v1610, 2
        %v1729 = vsel %vm1674, %v1726, %v1728
        %v1730 = vrot.slane %v1611, 2
        %v1731 = vrot.slane %v1612, 2
        %v1732 = vsel %vm1674, %v1730, %v1731
        %v1733 = vrot.slane %v1613, 2
        %v1734 = vsel %vm1674, %v1731, %v1733
        %v1735 = vrot.slane %v1614, 2
        %v1736 = vrot.slane %v1615, 2
        %v1737 = vsel %vm1674, %v1735, %v1736
        %v1738 = vrot.slane %v1616, 2
        %v1739 = vsel %vm1674, %v1736, %v1738
        %v1740 = vrot.slane %v1617, 2
        %v1741 = vrot.slane %v1618, 2
        %v1742 = vsel %vm1674, %v1740, %v1741
        %v1743 = vrot.slane %v1619, 2
        %v1744 = vsel %vm1674, %v1741, %v1743
        %v1745 = vrot.slane %v1620, 2
        %v1746 = vrot.slane %v1621, 2
        %v1747 = vsel %vm1674, %v1745, %v1746
        %v1748 = vrot.slane %v1622, 2
        %v1749 = vsel %vm1674, %v1746, %v1748
        %v1750 = vrot.slane %v1623, 2
        %v1751 = vrot.slane %v1624, 2
        %v1752 = vsel %vm1674, %v1750, %v1751
        %v1753 = vrot.slane %v1625, 2
        %v1754 = vsel %vm1674, %v1751, %v1753
        %v1787 = vadd.f32 %v1545, %v1677
        %v1788 = vadd.f32 %v1546, %v1679
        %v1789 = vadd.f32 %v1547, %v1682
        %v1790 = vadd.f32 %v1548, %v1684
        %v1791 = vadd.f32 %v1549, %v1687
        %v1792 = vadd.f32 %v1550, %v1689
        %v1793 = vadd.f32 %v1551, %v1692
        %v1794 = vadd.f32 %v1552, %v1694
        %v1795 = vadd.f32 %v1553, %v1697
        %v1796 = vadd.f32 %v1554, %v1699
        %v1797 = vadd.f32 %v1555, %v1702
        %v1798 = vadd.f32 %v1556, %v1704
        %v1799 = vadd.f32 %v1557, %v1707
        %v1800 = vadd.f32 %v1558, %v1709
        %v1801 = vadd.f32 %v1559, %v1712
        %v1802 = vadd.f32 %v1560, %v1714
        %v1803 = vadd.f32 %v1561, %v1717
        %v1804 = vadd.f32 %v1562, %v1719
        %v1805 = vadd.f32 %v1563, %v1722
        %v1806 = vadd.f32 %v1564, %v1724
        %v1807 = vadd.f32 %v1565, %v1727
        %v1808 = vadd.f32 %v1566, %v1729
        %v1809 = vadd.f32 %v1567, %v1732
        %v1810 = vadd.f32 %v1568, %v1734
        %v1811 = vadd.f32 %v1569, %v1737
        %v1812 = vadd.f32 %v1570, %v1739
        %v1813 = vadd.f32 %v1571, %v1742
        %v1814 = vadd.f32 %v1572, %v1744
        %v1815 = vadd.f32 %v1573, %v1747
        %v1816 = vadd.f32 %v1574, %v1749
        %v1817 = vadd.f32 %v1575, %v1752
        %v1818 = vadd.f32 %v1576, %v1754
        %v1819 = vperm.slane %v1268, 0
        %v1820 = vmul.f32 %v1216, %v1819
        %v1821 = vmul.f32 %v1217, %v1819
        %v1822 = vmul.f32 %v1219, %v1819
        %v1823 = vmul.f32 %v1220, %v1819
        %v1824 = vmul.f32 %v1222, %v1819
        %v1825 = vmul.f32 %v1223, %v1819
        %v1826 = vmul.f32 %v1225, %v1819
        %v1827 = vmul.f32 %v1226, %v1819
        %v1828 = vmul.f32 %v1228, %v1819
        %v1829 = vmul.f32 %v1229, %v1819
        %v1830 = vmul.f32 %v1231, %v1819
        %v1831 = vmul.f32 %v1232, %v1819
        %v1832 = vmul.f32 %v1234, %v1819
        %v1833 = vmul.f32 %v1235, %v1819
        %v1834 = vmul.f32 %v1237, %v1819
        %v1835 = vmul.f32 %v1238, %v1819
        %v1836 = vmul.f32 %v1240, %v1819
        %v1837 = vmul.f32 %v1241, %v1819
        %v1838 = vmul.f32 %v1243, %v1819
        %v1839 = vmul.f32 %v1244, %v1819
        %v1840 = vmul.f32 %v1246, %v1819
        %v1841 = vmul.f32 %v1247, %v1819
        %v1842 = vmul.f32 %v1249, %v1819
        %v1843 = vmul.f32 %v1250, %v1819
        %v1844 = vmul.f32 %v1252, %v1819
        %v1845 = vmul.f32 %v1253, %v1819
        %v1846 = vmul.f32 %v1255, %v1819
        %v1847 = vmul.f32 %v1256, %v1819
        %v1848 = vmul.f32 %v1258, %v1819
        %v1849 = vmul.f32 %v1259, %v1819
        %v1850 = vmul.f32 %v1261, %v1819
        %v1851 = vmul.f32 %v1262, %v1819
        %v1852 = vadd.f32 %v1787, %v1820
        %v1853 = vadd.f32 %v1788, %v1821
        %v1854 = vadd.f32 %v1789, %v1822
        %v1855 = vadd.f32 %v1790, %v1823
        %v1856 = vadd.f32 %v1791, %v1824
        %v1857 = vadd.f32 %v1792, %v1825
        %v1858 = vadd.f32 %v1793, %v1826
        %v1859 = vadd.f32 %v1794, %v1827
        %v1860 = vadd.f32 %v1795, %v1828
        %v1861 = vadd.f32 %v1796, %v1829
        %v1862 = vadd.f32 %v1797, %v1830
        %v1863 = vadd.f32 %v1798, %v1831
        %v1864 = vadd.f32 %v1799, %v1832
        %v1865 = vadd.f32 %v1800, %v1833
        %v1866 = vadd.f32 %v1801, %v1834
        %v1867 = vadd.f32 %v1802, %v1835
        %v1868 = vadd.f32 %v1803, %v1836
        %v1869 = vadd.f32 %v1804, %v1837
        %v1870 = vadd.f32 %v1805, %v1838
        %v1871 = vadd.f32 %v1806, %v1839
        %v1872 = vadd.f32 %v1807, %v1840
        %v1873 = vadd.f32 %v1808, %v1841
        %v1874 = vadd.f32 %v1809, %v1842
        %v1875 = vadd.f32 %v1810, %v1843
        %v1876 = vadd.f32 %v1811, %v1844
        %v1877 = vadd.f32 %v1812, %v1845
        %v1878 = vadd.f32 %v1813, %v1846
        %v1879 = vadd.f32 %v1814, %v1847
        %v1880 = vadd.f32 %v1815, %v1848
        %v1881 = vadd.f32 %v1816, %v1849
        %v1882 = vadd.f32 %v1817, %v1850
        %v1883 = vadd.f32 %v1818, %v1851
        %v1884 = vperm.slane %v1268, 1
        %v1885 = vmul.f32 %v1216, %v1884
        %v1886 = vmul.f32 %v1217, %v1884
        %v1887 = vmul.f32 %v1218, %v1884
        %v1888 = vmul.f32 %v1219, %v1884
        %v1889 = vmul.f32 %v1220, %v1884
        %v1890 = vmul.f32 %v1221, %v1884
        %v1891 = vmul.f32 %v1222, %v1884
        %v1892 = vmul.f32 %v1223, %v1884
        %v1893 = vmul.f32 %v1224, %v1884
        %v1894 = vmul.f32 %v1225, %v1884
        %v1895 = vmul.f32 %v1226, %v1884
        %v1896 = vmul.f32 %v1227, %v1884
        %v1897 = vmul.f32 %v1228, %v1884
        %v1898 = vmul.f32 %v1229, %v1884
        %v1899 = vmul.f32 %v1230, %v1884
        %v1900 = vmul.f32 %v1231, %v1884
        %v1901 = vmul.f32 %v1232, %v1884
        %v1902 = vmul.f32 %v1233, %v1884
        %v1903 = vmul.f32 %v1234, %v1884
        %v1904 = vmul.f32 %v1235, %v1884
        %v1905 = vmul.f32 %v1236, %v1884
        %v1906 = vmul.f32 %v1237, %v1884
        %v1907 = vmul.f32 %v1238, %v1884
        %v1908 = vmul.f32 %v1239, %v1884
        %v1909 = vmul.f32 %v1240, %v1884
        %v1910 = vmul.f32 %v1241, %v1884
        %v1911 = vmul.f32 %v1242, %v1884
        %v1912 = vmul.f32 %v1243, %v1884
        %v1913 = vmul.f32 %v1244, %v1884
        %v1914 = vmul.f32 %v1245, %v1884
        %v1915 = vmul.f32 %v1246, %v1884
        %v1916 = vmul.f32 %v1247, %v1884
        %v1917 = vmul.f32 %v1248, %v1884
        %v1918 = vmul.f32 %v1249, %v1884
        %v1919 = vmul.f32 %v1250, %v1884
        %v1920 = vmul.f32 %v1251, %v1884
        %v1921 = vmul.f32 %v1252, %v1884
        %v1922 = vmul.f32 %v1253, %v1884
        %v1923 = vmul.f32 %v1254, %v1884
        %v1924 = vmul.f32 %v1255, %v1884
        %v1925 = vmul.f32 %v1256, %v1884
        %v1926 = vmul.f32 %v1257, %v1884
        %v1927 = vmul.f32 %v1258, %v1884
        %v1928 = vmul.f32 %v1259, %v1884
        %v1929 = vmul.f32 %v1260, %v1884
        %v1930 = vmul.f32 %v1261, %v1884
        %v1931 = vmul.f32 %v1262, %v1884
        %v1932 = vmul.f32 %v1263, %v1884
        %v1981 = vrot.slane %v1885, 1
        %v1982 = vrot.slane %v1886, 1
        %v1983 = vsel %vm1432, %v1981, %v1982
        %v1984 = vrot.slane %v1887, 1
        %v1985 = vsel %vm1432, %v1982, %v1984
        %v1986 = vrot.slane %v1888, 1
        %v1987 = vrot.slane %v1889, 1
        %v1988 = vsel %vm1432, %v1986, %v1987
        %v1989 = vrot.slane %v1890, 1
        %v1990 = vsel %vm1432, %v1987, %v1989
        %v1991 = vrot.slane %v1891, 1
        %v1992 = vrot.slane %v1892, 1
        %v1993 = vsel %vm1432, %v1991, %v1992
        %v1994 = vrot.slane %v1893, 1
        %v1995 = vsel %vm1432, %v1992, %v1994
        %v1996 = vrot.slane %v1894, 1
        %v1997 = vrot.slane %v1895, 1
        %v1998 = vsel %vm1432, %v1996, %v1997
        %v1999 = vrot.slane %v1896, 1
        %v2000 = vsel %vm1432, %v1997, %v1999
        %v2001 = vrot.slane %v1897, 1
        %v2002 = vrot.slane %v1898, 1
        %v2003 = vsel %vm1432, %v2001, %v2002
        %v2004 = vrot.slane %v1899, 1
        %v2005 = vsel %vm1432, %v2002, %v2004
        %v2006 = vrot.slane %v1900, 1
        %v2007 = vrot.slane %v1901, 1
        %v2008 = vsel %vm1432, %v2006, %v2007
        %v2009 = vrot.slane %v1902, 1
        %v2010 = vsel %vm1432, %v2007, %v2009
        %v2011 = vrot.slane %v1903, 1
        %v2012 = vrot.slane %v1904, 1
        %v2013 = vsel %vm1432, %v2011, %v2012
        %v2014 = vrot.slane %v1905, 1
        %v2015 = vsel %vm1432, %v2012, %v2014
        %v2016 = vrot.slane %v1906, 1
        %v2017 = vrot.slane %v1907, 1
        %v2018 = vsel %vm1432, %v2016, %v2017
        %v2019 = vrot.slane %v1908, 1
        %v2020 = vsel %vm1432, %v2017, %v2019
        %v2021 = vrot.slane %v1909, 1
        %v2022 = vrot.slane %v1910, 1
        %v2023 = vsel %vm1432, %v2021, %v2022
        %v2024 = vrot.slane %v1911, 1
        %v2025 = vsel %vm1432, %v2022, %v2024
        %v2026 = vrot.slane %v1912, 1
        %v2027 = vrot.slane %v1913, 1
        %v2028 = vsel %vm1432, %v2026, %v2027
        %v2029 = vrot.slane %v1914, 1
        %v2030 = vsel %vm1432, %v2027, %v2029
        %v2031 = vrot.slane %v1915, 1
        %v2032 = vrot.slane %v1916, 1
        %v2033 = vsel %vm1432, %v2031, %v2032
        %v2034 = vrot.slane %v1917, 1
        %v2035 = vsel %vm1432, %v2032, %v2034
        %v2036 = vrot.slane %v1918, 1
        %v2037 = vrot.slane %v1919, 1
        %v2038 = vsel %vm1432, %v2036, %v2037
        %v2039 = vrot.slane %v1920, 1
        %v2040 = vsel %vm1432, %v2037, %v2039
        %v2041 = vrot.slane %v1921, 1
        %v2042 = vrot.slane %v1922, 1
        %v2043 = vsel %vm1432, %v2041, %v2042
        %v2044 = vrot.slane %v1923, 1
        %v2045 = vsel %vm1432, %v2042, %v2044
        %v2046 = vrot.slane %v1924, 1
        %v2047 = vrot.slane %v1925, 1
        %v2048 = vsel %vm1432, %v2046, %v2047
        %v2049 = vrot.slane %v1926, 1
        %v2050 = vsel %vm1432, %v2047, %v2049
        %v2051 = vrot.slane %v1927, 1
        %v2052 = vrot.slane %v1928, 1
        %v2053 = vsel %vm1432, %v2051, %v2052
        %v2054 = vrot.slane %v1929, 1
        %v2055 = vsel %vm1432, %v2052, %v2054
        %v2056 = vrot.slane %v1930, 1
        %v2057 = vrot.slane %v1931, 1
        %v2058 = vsel %vm1432, %v2056, %v2057
        %v2059 = vrot.slane %v1932, 1
        %v2060 = vsel %vm1432, %v2057, %v2059
        %v2093 = vadd.f32 %v1852, %v1983
        %v2094 = vadd.f32 %v1853, %v1985
        %v2095 = vadd.f32 %v1854, %v1988
        %v2096 = vadd.f32 %v1855, %v1990
        %v2097 = vadd.f32 %v1856, %v1993
        %v2098 = vadd.f32 %v1857, %v1995
        %v2099 = vadd.f32 %v1858, %v1998
        %v2100 = vadd.f32 %v1859, %v2000
        %v2101 = vadd.f32 %v1860, %v2003
        %v2102 = vadd.f32 %v1861, %v2005
        %v2103 = vadd.f32 %v1862, %v2008
        %v2104 = vadd.f32 %v1863, %v2010
        %v2105 = vadd.f32 %v1864, %v2013
        %v2106 = vadd.f32 %v1865, %v2015
        %v2107 = vadd.f32 %v1866, %v2018
        %v2108 = vadd.f32 %v1867, %v2020
        %v2109 = vadd.f32 %v1868, %v2023
        %v2110 = vadd.f32 %v1869, %v2025
        %v2111 = vadd.f32 %v1870, %v2028
        %v2112 = vadd.f32 %v1871, %v2030
        %v2113 = vadd.f32 %v1872, %v2033
        %v2114 = vadd.f32 %v1873, %v2035
        %v2115 = vadd.f32 %v1874, %v2038
        %v2116 = vadd.f32 %v1875, %v2040
        %v2117 = vadd.f32 %v1876, %v2043
        %v2118 = vadd.f32 %v1877, %v2045
        %v2119 = vadd.f32 %v1878, %v2048
        %v2120 = vadd.f32 %v1879, %v2050
        %v2121 = vadd.f32 %v1880, %v2053
        %v2122 = vadd.f32 %v1881, %v2055
        %v2123 = vadd.f32 %v1882, %v2058
        %v2124 = vadd.f32 %v1883, %v2060
        %v2125 = vperm.slane %v1268, 2
        %v2126 = vmul.f32 %v1216, %v2125
        %v2127 = vmul.f32 %v1217, %v2125
        %v2128 = vmul.f32 %v1218, %v2125
        %v2129 = vmul.f32 %v1219, %v2125
        %v2130 = vmul.f32 %v1220, %v2125
        %v2131 = vmul.f32 %v1221, %v2125
        %v2132 = vmul.f32 %v1222, %v2125
        %v2133 = vmul.f32 %v1223, %v2125
        %v2134 = vmul.f32 %v1224, %v2125
        %v2135 = vmul.f32 %v1225, %v2125
        %v2136 = vmul.f32 %v1226, %v2125
        %v2137 = vmul.f32 %v1227, %v2125
        %v2138 = vmul.f32 %v1228, %v2125
        %v2139 = vmul.f32 %v1229, %v2125
        %v2140 = vmul.f32 %v1230, %v2125
        %v2141 = vmul.f32 %v1231, %v2125
        %v2142 = vmul.f32 %v1232, %v2125
        %v2143 = vmul.f32 %v1233, %v2125
        %v2144 = vmul.f32 %v1234, %v2125
        %v2145 = vmul.f32 %v1235, %v2125
        %v2146 = vmul.f32 %v1236, %v2125
        %v2147 = vmul.f32 %v1237, %v2125
        %v2148 = vmul.f32 %v1238, %v2125
        %v2149 = vmul.f32 %v1239, %v2125
        %v2150 = vmul.f32 %v1240, %v2125
        %v2151 = vmul.f32 %v1241, %v2125
        %v2152 = vmul.f32 %v1242, %v2125
        %v2153 = vmul.f32 %v1243, %v2125
        %v2154 = vmul.f32 %v1244, %v2125
        %v2155 = vmul.f32 %v1245, %v2125
        %v2156 = vmul.f32 %v1246, %v2125
        %v2157 = vmul.f32 %v1247, %v2125
        %v2158 = vmul.f32 %v1248, %v2125
        %v2159 = vmul.f32 %v1249, %v2125
        %v2160 = vmul.f32 %v1250, %v2125
        %v2161 = vmul.f32 %v1251, %v2125
        %v2162 = vmul.f32 %v1252, %v2125
        %v2163 = vmul.f32 %v1253, %v2125
        %v2164 = vmul.f32 %v1254, %v2125
        %v2165 = vmul.f32 %v1255, %v2125
        %v2166 = vmul.f32 %v1256, %v2125
        %v2167 = vmul.f32 %v1257, %v2125
        %v2168 = vmul.f32 %v1258, %v2125
        %v2169 = vmul.f32 %v1259, %v2125
        %v2170 = vmul.f32 %v1260, %v2125
        %v2171 = vmul.f32 %v1261, %v2125
        %v2172 = vmul.f32 %v1262, %v2125
        %v2173 = vmul.f32 %v1263, %v2125
        %v2222 = vrot.slane %v2126, 2
        %v2223 = vrot.slane %v2127, 2
        %v2224 = vsel %vm1674, %v2222, %v2223
        %v2225 = vrot.slane %v2128, 2
        %v2226 = vsel %vm1674, %v2223, %v2225
        %v2227 = vrot.slane %v2129, 2
        %v2228 = vrot.slane %v2130, 2
        %v2229 = vsel %vm1674, %v2227, %v2228
        %v2230 = vrot.slane %v2131, 2
        %v2231 = vsel %vm1674, %v2228, %v2230
        %v2232 = vrot.slane %v2132, 2
        %v2233 = vrot.slane %v2133, 2
        %v2234 = vsel %vm1674, %v2232, %v2233
        %v2235 = vrot.slane %v2134, 2
        %v2236 = vsel %vm1674, %v2233, %v2235
        %v2237 = vrot.slane %v2135, 2
        %v2238 = vrot.slane %v2136, 2
        %v2239 = vsel %vm1674, %v2237, %v2238
        %v2240 = vrot.slane %v2137, 2
        %v2241 = vsel %vm1674, %v2238, %v2240
        %v2242 = vrot.slane %v2138, 2
        %v2243 = vrot.slane %v2139, 2
        %v2244 = vsel %vm1674, %v2242, %v2243
        %v2245 = vrot.slane %v2140, 2
        %v2246 = vsel %vm1674, %v2243, %v2245
        %v2247 = vrot.slane %v2141, 2
        %v2248 = vrot.slane %v2142, 2
        %v2249 = vsel %vm1674, %v2247, %v2248
        %v2250 = vrot.slane %v2143, 2
        %v2251 = vsel %vm1674, %v2248, %v2250
        %v2252 = vrot.slane %v2144, 2
        %v2253 = vrot.slane %v2145, 2
        %v2254 = vsel %vm1674, %v2252, %v2253
        %v2255 = vrot.slane %v2146, 2
        %v2256 = vsel %vm1674, %v2253, %v2255
        %v2257 = vrot.slane %v2147, 2
        %v2258 = vrot.slane %v2148, 2
        %v2259 = vsel %vm1674, %v2257, %v2258
        %v2260 = vrot.slane %v2149, 2
        %v2261 = vsel %vm1674, %v2258, %v2260
        %v2262 = vrot.slane %v2150, 2
        %v2263 = vrot.slane %v2151, 2
        %v2264 = vsel %vm1674, %v2262, %v2263
        %v2265 = vrot.slane %v2152, 2
        %v2266 = vsel %vm1674, %v2263, %v2265
        %v2267 = vrot.slane %v2153, 2
        %v2268 = vrot.slane %v2154, 2
        %v2269 = vsel %vm1674, %v2267, %v2268
        %v2270 = vrot.slane %v2155, 2
        %v2271 = vsel %vm1674, %v2268, %v2270
        %v2272 = vrot.slane %v2156, 2
        %v2273 = vrot.slane %v2157, 2
        %v2274 = vsel %vm1674, %v2272, %v2273
        %v2275 = vrot.slane %v2158, 2
        %v2276 = vsel %vm1674, %v2273, %v2275
        %v2277 = vrot.slane %v2159, 2
        %v2278 = vrot.slane %v2160, 2
        %v2279 = vsel %vm1674, %v2277, %v2278
        %v2280 = vrot.slane %v2161, 2
        %v2281 = vsel %vm1674, %v2278, %v2280
        %v2282 = vrot.slane %v2162, 2
        %v2283 = vrot.slane %v2163, 2
        %v2284 = vsel %vm1674, %v2282, %v2283
        %v2285 = vrot.slane %v2164, 2
        %v2286 = vsel %vm1674, %v2283, %v2285
        %v2287 = vrot.slane %v2165, 2
        %v2288 = vrot.slane %v2166, 2
        %v2289 = vsel %vm1674, %v2287, %v2288
        %v2290 = vrot.slane %v2167, 2
        %v2291 = vsel %vm1674, %v2288, %v2290
        %v2292 = vrot.slane %v2168, 2
        %v2293 = vrot.slane %v2169, 2
        %v2294 = vsel %vm1674, %v2292, %v2293
        %v2295 = vrot.slane %v2170, 2
        %v2296 = vsel %vm1674, %v2293, %v2295
        %v2297 = vrot.slane %v2171, 2
        %v2298 = vrot.slane %v2172, 2
        %v2299 = vsel %vm1674, %v2297, %v2298
        %v2300 = vrot.slane %v2173, 2
        %v2301 = vsel %vm1674, %v2298, %v2300
        %v2334 = vadd.f32 %v2093, %v2224
        %v2335 = vadd.f32 %v2094, %v2226
        %v2336 = vadd.f32 %v2095, %v2229
        %v2337 = vadd.f32 %v2096, %v2231
        %v2338 = vadd.f32 %v2097, %v2234
        %v2339 = vadd.f32 %v2098, %v2236
        %v2340 = vadd.f32 %v2099, %v2239
        %v2341 = vadd.f32 %v2100, %v2241
        %v2342 = vadd.f32 %v2101, %v2244
        %v2343 = vadd.f32 %v2102, %v2246
        %v2344 = vadd.f32 %v2103, %v2249
        %v2345 = vadd.f32 %v2104, %v2251
        %v2346 = vadd.f32 %v2105, %v2254
        %v2347 = vadd.f32 %v2106, %v2256
        %v2348 = vadd.f32 %v2107, %v2259
        %v2349 = vadd.f32 %v2108, %v2261
        %v2350 = vadd.f32 %v2109, %v2264
        %v2351 = vadd.f32 %v2110, %v2266
        %v2352 = vadd.f32 %v2111, %v2269
        %v2353 = vadd.f32 %v2112, %v2271
        %v2354 = vadd.f32 %v2113, %v2274
        %v2355 = vadd.f32 %v2114, %v2276
        %v2356 = vadd.f32 %v2115, %v2279
        %v2357 = vadd.f32 %v2116, %v2281
        %v2358 = vadd.f32 %v2117, %v2284
        %v2359 = vadd.f32 %v2118, %v2286
        %v2360 = vadd.f32 %v2119, %v2289
        %v2361 = vadd.f32 %v2120, %v2291
        %v2362 = vadd.f32 %v2121, %v2294
        %v2363 = vadd.f32 %v2122, %v2296
        %v2364 = vadd.f32 %v2123, %v2299
        %v2365 = vadd.f32 %v2124, %v2301
        %v2366 = vperm.slane %v1269, 0
        %v2367 = vmul.f32 %v1219, %v2366
        %v2368 = vmul.f32 %v1220, %v2366
        %v2369 = vmul.f32 %v1222, %v2366
        %v2370 = vmul.f32 %v1223, %v2366
        %v2371 = vmul.f32 %v1225, %v2366
        %v2372 = vmul.f32 %v1226, %v2366
        %v2373 = vmul.f32 %v1228, %v2366
        %v2374 = vmul.f32 %v1229, %v2366
        %v2375 = vmul.f32 %v1231, %v2366
        %v2376 = vmul.f32 %v1232, %v2366
        %v2377 = vmul.f32 %v1234, %v2366
        %v2378 = vmul.f32 %v1235, %v2366
        %v2379 = vmul.f32 %v1237, %v2366
        %v2380 = vmul.f32 %v1238, %v2366
        %v2381 = vmul.f32 %v1240, %v2366
        %v2382 = vmul.f32 %v1241, %v2366
        %v2383 = vmul.f32 %v1243, %v2366
        %v2384 = vmul.f32 %v1244, %v2366
        %v2385 = vmul.f32 %v1246, %v2366
        %v2386 = vmul.f32 %v1247, %v2366
        %v2387 = vmul.f32 %v1249, %v2366
        %v2388 = vmul.f32 %v1250, %v2366
        %v2389 = vmul.f32 %v1252, %v2366
        %v2390 = vmul.f32 %v1253, %v2366
        %v2391 = vmul.f32 %v1255, %v2366
        %v2392 = vmul.f32 %v1256, %v2366
        %v2393 = vmul.f32 %v1258, %v2366
        %v2394 = vmul.f32 %v1259, %v2366
        %v2395 = vmul.f32 %v1261, %v2366
        %v2396 = vmul.f32 %v1262, %v2366
        %v2397 = vmul.f32 %v1264, %v2366
        %v2398 = vmul.f32 %v1265, %v2366
        %v2399 = vadd.f32 %v2334, %v2367
        %v2400 = vadd.f32 %v2335, %v2368
        %v2401 = vadd.f32 %v2336, %v2369
        %v2402 = vadd.f32 %v2337, %v2370
        %v2403 = vadd.f32 %v2338, %v2371
        %v2404 = vadd.f32 %v2339, %v2372
        %v2405 = vadd.f32 %v2340, %v2373
        %v2406 = vadd.f32 %v2341, %v2374
        %v2407 = vadd.f32 %v2342, %v2375
        %v2408 = vadd.f32 %v2343, %v2376
        %v2409 = vadd.f32 %v2344, %v2377
        %v2410 = vadd.f32 %v2345, %v2378
        %v2411 = vadd.f32 %v2346, %v2379
        %v2412 = vadd.f32 %v2347, %v2380
        %v2413 = vadd.f32 %v2348, %v2381
        %v2414 = vadd.f32 %v2349, %v2382
        %v2415 = vadd.f32 %v2350, %v2383
        %v2416 = vadd.f32 %v2351, %v2384
        %v2417 = vadd.f32 %v2352, %v2385
        %v2418 = vadd.f32 %v2353, %v2386
        %v2419 = vadd.f32 %v2354, %v2387
        %v2420 = vadd.f32 %v2355, %v2388
        %v2421 = vadd.f32 %v2356, %v2389
        %v2422 = vadd.f32 %v2357, %v2390
        %v2423 = vadd.f32 %v2358, %v2391
        %v2424 = vadd.f32 %v2359, %v2392
        %v2425 = vadd.f32 %v2360, %v2393
        %v2426 = vadd.f32 %v2361, %v2394
        %v2427 = vadd.f32 %v2362, %v2395
        %v2428 = vadd.f32 %v2363, %v2396
        %v2429 = vadd.f32 %v2364, %v2397
        %v2430 = vadd.f32 %v2365, %v2398
        %v2431 = vperm.slane %v1269, 1
        %v2432 = vmul.f32 %v1219, %v2431
        %v2433 = vmul.f32 %v1220, %v2431
        %v2434 = vmul.f32 %v1221, %v2431
        %v2435 = vmul.f32 %v1222, %v2431
        %v2436 = vmul.f32 %v1223, %v2431
        %v2437 = vmul.f32 %v1224, %v2431
        %v2438 = vmul.f32 %v1225, %v2431
        %v2439 = vmul.f32 %v1226, %v2431
        %v2440 = vmul.f32 %v1227, %v2431
        %v2441 = vmul.f32 %v1228, %v2431
        %v2442 = vmul.f32 %v1229, %v2431
        %v2443 = vmul.f32 %v1230, %v2431
        %v2444 = vmul.f32 %v1231, %v2431
        %v2445 = vmul.f32 %v1232, %v2431
        %v2446 = vmul.f32 %v1233, %v2431
        %v2447 = vmul.f32 %v1234, %v2431
        %v2448 = vmul.f32 %v1235, %v2431
        %v2449 = vmul.f32 %v1236, %v2431
        %v2450 = vmul.f32 %v1237, %v2431
        %v2451 = vmul.f32 %v1238, %v2431
        %v2452 = vmul.f32 %v1239, %v2431
        %v2453 = vmul.f32 %v1240, %v2431
        %v2454 = vmul.f32 %v1241, %v2431
        %v2455 = vmul.f32 %v1242, %v2431
        %v2456 = vmul.f32 %v1243, %v2431
        %v2457 = vmul.f32 %v1244, %v2431
        %v2458 = vmul.f32 %v1245, %v2431
        %v2459 = vmul.f32 %v1246, %v2431
        %v2460 = vmul.f32 %v1247, %v2431
        %v2461 = vmul.f32 %v1248, %v2431
        %v2462 = vmul.f32 %v1249, %v2431
        %v2463 = vmul.f32 %v1250, %v2431
        %v2464 = vmul.f32 %v1251, %v2431
        %v2465 = vmul.f32 %v1252, %v2431
        %v2466 = vmul.f32 %v1253, %v2431
        %v2467 = vmul.f32 %v1254, %v2431
        %v2468 = vmul.f32 %v1255, %v2431
        %v2469 = vmul.f32 %v1256, %v2431
        %v2470 = vmul.f32 %v1257, %v2431
        %v2471 = vmul.f32 %v1258, %v2431
        %v2472 = vmul.f32 %v1259, %v2431
        %v2473 = vmul.f32 %v1260, %v2431
        %v2474 = vmul.f32 %v1261, %v2431
        %v2475 = vmul.f32 %v1262, %v2431
        %v2476 = vmul.f32 %v1263, %v2431
        %v2477 = vmul.f32 %v1264, %v2431
        %v2478 = vmul.f32 %v1265, %v2431
        %v2479 = vmul.f32 %v1266, %v2431
        %v2528 = vrot.slane %v2432, 1
        %v2529 = vrot.slane %v2433, 1
        %v2530 = vsel %vm1432, %v2528, %v2529
        %v2531 = vrot.slane %v2434, 1
        %v2532 = vsel %vm1432, %v2529, %v2531
        %v2533 = vrot.slane %v2435, 1
        %v2534 = vrot.slane %v2436, 1
        %v2535 = vsel %vm1432, %v2533, %v2534
        %v2536 = vrot.slane %v2437, 1
        %v2537 = vsel %vm1432, %v2534, %v2536
        %v2538 = vrot.slane %v2438, 1
        %v2539 = vrot.slane %v2439, 1
        %v2540 = vsel %vm1432, %v2538, %v2539
        %v2541 = vrot.slane %v2440, 1
        %v2542 = vsel %vm1432, %v2539, %v2541
        %v2543 = vrot.slane %v2441, 1
        %v2544 = vrot.slane %v2442, 1
        %v2545 = vsel %vm1432, %v2543, %v2544
        %v2546 = vrot.slane %v2443, 1
        %v2547 = vsel %vm1432, %v2544, %v2546
        %v2548 = vrot.slane %v2444, 1
        %v2549 = vrot.slane %v2445, 1
        %v2550 = vsel %vm1432, %v2548, %v2549
        %v2551 = vrot.slane %v2446, 1
        %v2552 = vsel %vm1432, %v2549, %v2551
        %v2553 = vrot.slane %v2447, 1
        %v2554 = vrot.slane %v2448, 1
        %v2555 = vsel %vm1432, %v2553, %v2554
        %v2556 = vrot.slane %v2449, 1
        %v2557 = vsel %vm1432, %v2554, %v2556
        %v2558 = vrot.slane %v2450, 1
        %v2559 = vrot.slane %v2451, 1
        %v2560 = vsel %vm1432, %v2558, %v2559
        %v2561 = vrot.slane %v2452, 1
        %v2562 = vsel %vm1432, %v2559, %v2561
        %v2563 = vrot.slane %v2453, 1
        %v2564 = vrot.slane %v2454, 1
        %v2565 = vsel %vm1432, %v2563, %v2564
        %v2566 = vrot.slane %v2455, 1
        %v2567 = vsel %vm1432, %v2564, %v2566
        %v2568 = vrot.slane %v2456, 1
        %v2569 = vrot.slane %v2457, 1
        %v2570 = vsel %vm1432, %v2568, %v2569
        %v2571 = vrot.slane %v2458, 1
        %v2572 = vsel %vm1432, %v2569, %v2571
        %v2573 = vrot.slane %v2459, 1
        %v2574 = vrot.slane %v2460, 1
        %v2575 = vsel %vm1432, %v2573, %v2574
        %v2576 = vrot.slane %v2461, 1
        %v2577 = vsel %vm1432, %v2574, %v2576
        %v2578 = vrot.slane %v2462, 1
        %v2579 = vrot.slane %v2463, 1
        %v2580 = vsel %vm1432, %v2578, %v2579
        %v2581 = vrot.slane %v2464, 1
        %v2582 = vsel %vm1432, %v2579, %v2581
        %v2583 = vrot.slane %v2465, 1
        %v2584 = vrot.slane %v2466, 1
        %v2585 = vsel %vm1432, %v2583, %v2584
        %v2586 = vrot.slane %v2467, 1
        %v2587 = vsel %vm1432, %v2584, %v2586
        %v2588 = vrot.slane %v2468, 1
        %v2589 = vrot.slane %v2469, 1
        %v2590 = vsel %vm1432, %v2588, %v2589
        %v2591 = vrot.slane %v2470, 1
        %v2592 = vsel %vm1432, %v2589, %v2591
        %v2593 = vrot.slane %v2471, 1
        %v2594 = vrot.slane %v2472, 1
        %v2595 = vsel %vm1432, %v2593, %v2594
        %v2596 = vrot.slane %v2473, 1
        %v2597 = vsel %vm1432, %v2594, %v2596
        %v2598 = vrot.slane %v2474, 1
        %v2599 = vrot.slane %v2475, 1
        %v2600 = vsel %vm1432, %v2598, %v2599
        %v2601 = vrot.slane %v2476, 1
        %v2602 = vsel %vm1432, %v2599, %v2601
        %v2603 = vrot.slane %v2477, 1
        %v2604 = vrot.slane %v2478, 1
        %v2605 = vsel %vm1432, %v2603, %v2604
        %v2606 = vrot.slane %v2479, 1
        %v2607 = vsel %vm1432, %v2604, %v2606
        %v2640 = vadd.f32 %v2399, %v2530
        %v2641 = vadd.f32 %v2400, %v2532
        %v2642 = vadd.f32 %v2401, %v2535
        %v2643 = vadd.f32 %v2402, %v2537
        %v2644 = vadd.f32 %v2403, %v2540
        %v2645 = vadd.f32 %v2404, %v2542
        %v2646 = vadd.f32 %v2405, %v2545
        %v2647 = vadd.f32 %v2406, %v2547
        %v2648 = vadd.f32 %v2407, %v2550
        %v2649 = vadd.f32 %v2408, %v2552
        %v2650 = vadd.f32 %v2409, %v2555
        %v2651 = vadd.f32 %v2410, %v2557
        %v2652 = vadd.f32 %v2411, %v2560
        %v2653 = vadd.f32 %v2412, %v2562
        %v2654 = vadd.f32 %v2413, %v2565
        %v2655 = vadd.f32 %v2414, %v2567
        %v2656 = vadd.f32 %v2415, %v2570
        %v2657 = vadd.f32 %v2416, %v2572
        %v2658 = vadd.f32 %v2417, %v2575
        %v2659 = vadd.f32 %v2418, %v2577
        %v2660 = vadd.f32 %v2419, %v2580
        %v2661 = vadd.f32 %v2420, %v2582
        %v2662 = vadd.f32 %v2421, %v2585
        %v2663 = vadd.f32 %v2422, %v2587
        %v2664 = vadd.f32 %v2423, %v2590
        %v2665 = vadd.f32 %v2424, %v2592
        %v2666 = vadd.f32 %v2425, %v2595
        %v2667 = vadd.f32 %v2426, %v2597
        %v2668 = vadd.f32 %v2427, %v2600
        %v2669 = vadd.f32 %v2428, %v2602
        %v2670 = vadd.f32 %v2429, %v2605
        %v2671 = vadd.f32 %v2430, %v2607
        %v2672 = vperm.slane %v1269, 2
        %v2673 = vmul.f32 %v1219, %v2672
        %v2674 = vmul.f32 %v1220, %v2672
        %v2675 = vmul.f32 %v1221, %v2672
        %v2676 = vmul.f32 %v1222, %v2672
        %v2677 = vmul.f32 %v1223, %v2672
        %v2678 = vmul.f32 %v1224, %v2672
        %v2679 = vmul.f32 %v1225, %v2672
        %v2680 = vmul.f32 %v1226, %v2672
        %v2681 = vmul.f32 %v1227, %v2672
        %v2682 = vmul.f32 %v1228, %v2672
        %v2683 = vmul.f32 %v1229, %v2672
        %v2684 = vmul.f32 %v1230, %v2672
        %v2685 = vmul.f32 %v1231, %v2672
        %v2686 = vmul.f32 %v1232, %v2672
        %v2687 = vmul.f32 %v1233, %v2672
        %v2688 = vmul.f32 %v1234, %v2672
        %v2689 = vmul.f32 %v1235, %v2672
        %v2690 = vmul.f32 %v1236, %v2672
        %v2691 = vmul.f32 %v1237, %v2672
        %v2692 = vmul.f32 %v1238, %v2672
        %v2693 = vmul.f32 %v1239, %v2672
        %v2694 = vmul.f32 %v1240, %v2672
        %v2695 = vmul.f32 %v1241, %v2672
        %v2696 = vmul.f32 %v1242, %v2672
        %v2697 = vmul.f32 %v1243, %v2672
        %v2698 = vmul.f32 %v1244, %v2672
        %v2699 = vmul.f32 %v1245, %v2672
        %v2700 = vmul.f32 %v1246, %v2672
        %v2701 = vmul.f32 %v1247, %v2672
        %v2702 = vmul.f32 %v1248, %v2672
        %v2703 = vmul.f32 %v1249, %v2672
        %v2704 = vmul.f32 %v1250, %v2672
        %v2705 = vmul.f32 %v1251, %v2672
        %v2706 = vmul.f32 %v1252, %v2672
        %v2707 = vmul.f32 %v1253, %v2672
        %v2708 = vmul.f32 %v1254, %v2672
        %v2709 = vmul.f32 %v1255, %v2672
        %v2710 = vmul.f32 %v1256, %v2672
        %v2711 = vmul.f32 %v1257, %v2672
        %v2712 = vmul.f32 %v1258, %v2672
        %v2713 = vmul.f32 %v1259, %v2672
        %v2714 = vmul.f32 %v1260, %v2672
        %v2715 = vmul.f32 %v1261, %v2672
        %v2716 = vmul.f32 %v1262, %v2672
        %v2717 = vmul.f32 %v1263, %v2672
        %v2718 = vmul.f32 %v1264, %v2672
        %v2719 = vmul.f32 %v1265, %v2672
        %v2720 = vmul.f32 %v1266, %v2672
        %v2769 = vrot.slane %v2673, 2
        %v2770 = vrot.slane %v2674, 2
        %v2771 = vsel %vm1674, %v2769, %v2770
        %v2772 = vrot.slane %v2675, 2
        %v2773 = vsel %vm1674, %v2770, %v2772
        %v2774 = vrot.slane %v2676, 2
        %v2775 = vrot.slane %v2677, 2
        %v2776 = vsel %vm1674, %v2774, %v2775
        %v2777 = vrot.slane %v2678, 2
        %v2778 = vsel %vm1674, %v2775, %v2777
        %v2779 = vrot.slane %v2679, 2
        %v2780 = vrot.slane %v2680, 2
        %v2781 = vsel %vm1674, %v2779, %v2780
        %v2782 = vrot.slane %v2681, 2
        %v2783 = vsel %vm1674, %v2780, %v2782
        %v2784 = vrot.slane %v2682, 2
        %v2785 = vrot.slane %v2683, 2
        %v2786 = vsel %vm1674, %v2784, %v2785
        %v2787 = vrot.slane %v2684, 2
        %v2788 = vsel %vm1674, %v2785, %v2787
        %v2789 = vrot.slane %v2685, 2
        %v2790 = vrot.slane %v2686, 2
        %v2791 = vsel %vm1674, %v2789, %v2790
        %v2792 = vrot.slane %v2687, 2
        %v2793 = vsel %vm1674, %v2790, %v2792
        %v2794 = vrot.slane %v2688, 2
        %v2795 = vrot.slane %v2689, 2
        %v2796 = vsel %vm1674, %v2794, %v2795
        %v2797 = vrot.slane %v2690, 2
        %v2798 = vsel %vm1674, %v2795, %v2797
        %v2799 = vrot.slane %v2691, 2
        %v2800 = vrot.slane %v2692, 2
        %v2801 = vsel %vm1674, %v2799, %v2800
        %v2802 = vrot.slane %v2693, 2
        %v2803 = vsel %vm1674, %v2800, %v2802
        %v2804 = vrot.slane %v2694, 2
        %v2805 = vrot.slane %v2695, 2
        %v2806 = vsel %vm1674, %v2804, %v2805
        %v2807 = vrot.slane %v2696, 2
        %v2808 = vsel %vm1674, %v2805, %v2807
        %v2809 = vrot.slane %v2697, 2
        %v2810 = vrot.slane %v2698, 2
        %v2811 = vsel %vm1674, %v2809, %v2810
        %v2812 = vrot.slane %v2699, 2
        %v2813 = vsel %vm1674, %v2810, %v2812
        %v2814 = vrot.slane %v2700, 2
        %v2815 = vrot.slane %v2701, 2
        %v2816 = vsel %vm1674, %v2814, %v2815
        %v2817 = vrot.slane %v2702, 2
        %v2818 = vsel %vm1674, %v2815, %v2817
        %v2819 = vrot.slane %v2703, 2
        %v2820 = vrot.slane %v2704, 2
        %v2821 = vsel %vm1674, %v2819, %v2820
        %v2822 = vrot.slane %v2705, 2
        %v2823 = vsel %vm1674, %v2820, %v2822
        %v2824 = vrot.slane %v2706, 2
        %v2825 = vrot.slane %v2707, 2
        %v2826 = vsel %vm1674, %v2824, %v2825
        %v2827 = vrot.slane %v2708, 2
        %v2828 = vsel %vm1674, %v2825, %v2827
        %v2829 = vrot.slane %v2709, 2
        %v2830 = vrot.slane %v2710, 2
        %v2831 = vsel %vm1674, %v2829, %v2830
        %v2832 = vrot.slane %v2711, 2
        %v2833 = vsel %vm1674, %v2830, %v2832
        %v2834 = vrot.slane %v2712, 2
        %v2835 = vrot.slane %v2713, 2
        %v2836 = vsel %vm1674, %v2834, %v2835
        %v2837 = vrot.slane %v2714, 2
        %v2838 = vsel %vm1674, %v2835, %v2837
        %v2839 = vrot.slane %v2715, 2
        %v2840 = vrot.slane %v2716, 2
        %v2841 = vsel %vm1674, %v2839, %v2840
        %v2842 = vrot.slane %v2717, 2
        %v2843 = vsel %vm1674, %v2840, %v2842
        %v2844 = vrot.slane %v2718, 2
        %v2845 = vrot.slane %v2719, 2
        %v2846 = vsel %vm1674, %v2844, %v2845
        %v2847 = vrot.slane %v2720, 2
        %v2848 = vsel %vm1674, %v2845, %v2847
        %v2881 = vadd.f32 %v2640, %v2771
        %v2882 = vadd.f32 %v2641, %v2773
        %v2883 = vadd.f32 %v2642, %v2776
        %v2884 = vadd.f32 %v2643, %v2778
        %v2885 = vadd.f32 %v2644, %v2781
        %v2886 = vadd.f32 %v2645, %v2783
        %v2887 = vadd.f32 %v2646, %v2786
        %v2888 = vadd.f32 %v2647, %v2788
        %v2889 = vadd.f32 %v2648, %v2791
        %v2890 = vadd.f32 %v2649, %v2793
        %v2891 = vadd.f32 %v2650, %v2796
        %v2892 = vadd.f32 %v2651, %v2798
        %v2893 = vadd.f32 %v2652, %v2801
        %v2894 = vadd.f32 %v2653, %v2803
        %v2895 = vadd.f32 %v2654, %v2806
        %v2896 = vadd.f32 %v2655, %v2808
        %v2897 = vadd.f32 %v2656, %v2811
        %v2898 = vadd.f32 %v2657, %v2813
        %v2899 = vadd.f32 %v2658, %v2816
        %v2900 = vadd.f32 %v2659, %v2818
        %v2901 = vadd.f32 %v2660, %v2821
        %v2902 = vadd.f32 %v2661, %v2823
        %v2903 = vadd.f32 %v2662, %v2826
        %v2904 = vadd.f32 %v2663, %v2828
        %v2905 = vadd.f32 %v2664, %v2831
        %v2906 = vadd.f32 %v2665, %v2833
        %v2907 = vadd.f32 %v2666, %v2836
        %v2908 = vadd.f32 %v2667, %v2838
        %v2909 = vadd.f32 %v2668, %v2841
        %v2910 = vadd.f32 %v2669, %v2843
        %v2911 = vadd.f32 %v2670, %v2846
        %v2912 = vadd.f32 %v2671, %v2848
        %v2913 = vld [vmem:[%s5] sm:$0x1]
        %v2915 = vperm.slane %v2913, 0
        %v2917 = vadd.f32 %v2881, %v2915
        %v2918 = vadd.f32 %v2882, %v2915
        %v2919 = vadd.f32 %v2883, %v2915
        %v2920 = vadd.f32 %v2884, %v2915
        %v2921 = vadd.f32 %v2885, %v2915
        %v2922 = vadd.f32 %v2886, %v2915
        %v2923 = vadd.f32 %v2887, %v2915
        %v2924 = vadd.f32 %v2888, %v2915
        %v2925 = vadd.f32 %v2889, %v2915
        %v2926 = vadd.f32 %v2890, %v2915
        %v2927 = vadd.f32 %v2891, %v2915
        %v2928 = vadd.f32 %v2892, %v2915
        %v2929 = vadd.f32 %v2893, %v2915
        %v2930 = vadd.f32 %v2894, %v2915
        %v2931 = vadd.f32 %v2895, %v2915
        %v2932 = vadd.f32 %v2896, %v2915
        %v2933 = vadd.f32 %v2897, %v2915
        %v2934 = vadd.f32 %v2898, %v2915
        %v2935 = vadd.f32 %v2899, %v2915
        %v2936 = vadd.f32 %v2900, %v2915
        %v2937 = vadd.f32 %v2901, %v2915
        %v2938 = vadd.f32 %v2902, %v2915
        %v2939 = vadd.f32 %v2903, %v2915
        %v2940 = vadd.f32 %v2904, %v2915
        %v2941 = vadd.f32 %v2905, %v2915
        %v2942 = vadd.f32 %v2906, %v2915
        %v2943 = vadd.f32 %v2907, %v2915
        %v2944 = vadd.f32 %v2908, %v2915
        %v2945 = vadd.f32 %v2909, %v2915
        %v2946 = vadd.f32 %v2910, %v2915
        %v2947 = vadd.f32 %v2911, %v2915
        %v2948 = vadd.f32 %v2912, %v2915
        %v2949 = vmax.f32 %v2917, 0.0
        %v2950 = vmax.f32 %v2918, 0.0
        %v2951 = vmax.f32 %v2919, 0.0
        %v2952 = vmax.f32 %v2920, 0.0
        %v2953 = vmax.f32 %v2921, 0.0
        %v2954 = vmax.f32 %v2922, 0.0
        %v2955 = vmax.f32 %v2923, 0.0
        %v2956 = vmax.f32 %v2924, 0.0
        %v2957 = vmax.f32 %v2925, 0.0
        %v2958 = vmax.f32 %v2926, 0.0
        %v2959 = vmax.f32 %v2927, 0.0
        %v2960 = vmax.f32 %v2928, 0.0
        %v2961 = vmax.f32 %v2929, 0.0
        %v2962 = vmax.f32 %v2930, 0.0
        %v2963 = vmax.f32 %v2931, 0.0
        %v2964 = vmax.f32 %v2932, 0.0
        %v2965 = vmax.f32 %v2933, 0.0
        %v2966 = vmax.f32 %v2934, 0.0
        %v2967 = vmax.f32 %v2935, 0.0
        %v2968 = vmax.f32 %v2936, 0.0
        %v2969 = vmax.f32 %v2937, 0.0
        %v2970 = vmax.f32 %v2938, 0.0
        %v2971 = vmax.f32 %v2939, 0.0
        %v2972 = vmax.f32 %v2940, 0.0
        %v2973 = vmax.f32 %v2941, 0.0
        %v2974 = vmax.f32 %v2942, 0.0
        %v2975 = vmax.f32 %v2943, 0.0
        %v2976 = vmax.f32 %v2944, 0.0
        %v2977 = vmax.f32 %v2945, 0.0
        %v2978 = vmax.f32 %v2946, 0.0
        %v2979 = vmax.f32 %v2947, 0.0
        %v2980 = vmax.f32 %v2948, 0.0
        %v2981 = vmin.f32 %v2949, 6.0
        %v2982 = vmin.f32 %v2950, 6.0
        %v2983 = vmin.f32 %v2951, 6.0
        %v2984 = vmin.f32 %v2952, 6.0
        %v2985 = vmin.f32 %v2953, 6.0
        %v2986 = vmin.f32 %v2954, 6.0
        %v2987 = vmin.f32 %v2955, 6.0
        %v2988 = vmin.f32 %v2956, 6.0
        %v2989 = vmin.f32 %v2957, 6.0
        %v2990 = vmin.f32 %v2958, 6.0
        %v2991 = vmin.f32 %v2959, 6.0
        %v2992 = vmin.f32 %v2960, 6.0
        %v2993 = vmin.f32 %v2961, 6.0
        %v2994 = vmin.f32 %v2962, 6.0
        %v2995 = vmin.f32 %v2963, 6.0
        %v2996 = vmin.f32 %v2964, 6.0
        %v2997 = vmin.f32 %v2965, 6.0
        %v2998 = vmin.f32 %v2966, 6.0
        %v2999 = vmin.f32 %v2967, 6.0
        %v3000 = vmin.f32 %v2968, 6.0
        %v3001 = vmin.f32 %v2969, 6.0
        %v3002 = vmin.f32 %v2970, 6.0
        %v3003 = vmin.f32 %v2971, 6.0
        %v3004 = vmin.f32 %v2972, 6.0
        %v3005 = vmin.f32 %v2973, 6.0
        %v3006 = vmin.f32 %v2974, 6.0
        %v3007 = vmin.f32 %v2975, 6.0
        %v3008 = vmin.f32 %v2976, 6.0
        %v3009 = vmin.f32 %v2977, 6.0
        %v3010 = vmin.f32 %v2978, 6.0
        %v3011 = vmin.f32 %v2979, 6.0
        %v3012 = vmin.f32 %v2980, 6.0
        %v3013 = vld [vmem:[%s6] sm:$0xff]
        %v3014 = vld [vmem:[%s7] sm:$0xff]
        %3016 = vset.pattern.permute.xlu0 0
        %3017 = vperm.xlu0 %3016, %v3014
        %v3018 = vpop.permute.xlu0 %3017
        %vm3020 = vcmask 392192
        %v3022 = vsel %vm3020, %v3013, 0
        %v3025 = vsel %vm3020, %v2981, 0
        %v3028 = vsel %vm3020, %v2982, 0
        %v3031 = vsel %vm3020, %v2983, 0
        %v3034 = vsel %vm3020, %v2984, 0
        %v3037 = vsel %vm3020, %v2985, 0
        %v3040 = vsel %vm3020, %v2986, 0
        %v3043 = vsel %vm3020, %v2987, 0
        %v3046 = vsel %vm3020, %v2988, 0
        %v3049 = vsel %vm3020, %v2989, 0
        %v3052 = vsel %vm3020, %v2990, 0
        %v3055 = vsel %vm3020, %v2991, 0
        %v3058 = vsel %vm3020, %v2992, 0
        %v3061 = vsel %vm3020, %v2993, 0
        %v3064 = vsel %vm3020, %v2994, 0
        %v3067 = vsel %vm3020, %v2995, 0
        %v3070 = vsel %vm3020, %v2996, 0
        %v3073 = vsel %vm3020, %v2997, 0
        %v3076 = vsel %vm3020, %v2998, 0
        %v3079 = vsel %vm3020, %v2999, 0
        %v3082 = vsel %vm3020, %v3000, 0
        %v3085 = vsel %vm3020, %v3001, 0
        %v3088 = vsel %vm3020, %v3002, 0
        %v3091 = vsel %vm3020, %v3003, 0
        %v3094 = vsel %vm3020, %v3004, 0
        %v3097 = vsel %vm3020, %v3005, 0
        %v3100 = vsel %vm3020, %v3006, 0
        %v3103 = vsel %vm3020, %v3007, 0
        %v3106 = vsel %vm3020, %v3008, 0
        %v3109 = vsel %vm3020, %v3009, 0
        %v3112 = vsel %vm3020, %v3010, 0
        %v3115 = vsel %vm3020, %v3011, 0
        %v3118 = vsel %vm3020, %v3012, 0
        %3120 = vmatpush.xpose.msra.mxu0 %v3070
        %3121 = vmatpush.xpose.msra.mxu0 %v3067
        %3122 = vmatpush.xpose.msra.mxu0 %v3064
        %3123 = vmatpush.xpose.msra.mxu0 %v3061
        %3124 = vmatpush.xpose.msra.mxu0 %v3058
        %3125 = vmatpush.xpose.msra.mxu0 %v3055
        %3126 = vmatpush.xpose.msra.mxu0 %v3052
        %3127 = vmatpush.xpose.msra.mxu0 %v3049
        %3128 = vmatpush.xpose.msra.mxu0 %v3046
        %3129 = vmatpush.xpose.msra.mxu0 %v3043
        %3130 = vmatpush.xpose.msra.mxu0 %v3040
        %3131 = vmatpush.xpose.msra.mxu0 %v3037
        %3132 = vmatpush.xpose.msra.mxu0 %v3034
        %3133 = vmatpush.xpose.msra.mxu0 %v3031
        %3134 = vmatpush.xpose.msra.mxu0 %v3028
        %3135 = vmatpush.xpose.msra.mxu0 %v3025
        %3136 = vmatmul.f32.gmra.mxu0 %v3022
        %v3137 = vpop.f32.mrf.mxu0
        %v3138 = vadd.f32 %v3018, %v3137
        %3139 = vdwg.mxu0
        %3140 = vmatpush.xpose.msra.mxu0 %v3118
        %3141 = vmatpush.xpose.msra.mxu0 %v3115
        %3142 = vmatpush.xpose.msra.mxu0 %v3112
        %3143 = vmatpush.xpose.msra.mxu0 %v3109
        %3144 = vmatpush.xpose.msra.mxu0 %v3106
        %3145 = vmatpush.xpose.msra.mxu0 %v3103
        %3146 = vmatpush.xpose.msra.mxu0 %v3100
        %3147 = vmatpush.xpose.msra.mxu0 %v3097
        %3148 = vmatpush.xpose.msra.mxu0 %v3094
        %3149 = vmatpush.xpose.msra.mxu0 %v3091
        %3150 = vmatpush.xpose.msra.mxu0 %v3088
        %3151 = vmatpush.xpose.msra.mxu0 %v3085
        %3152 = vmatpush.xpose.msra.mxu0 %v3082
        %3153 = vmatpush.xpose.msra.mxu0 %v3079
        %3154 = vmatpush.xpose.msra.mxu0 %v3076
        %3155 = vmatpush.xpose.msra.mxu0 %v3073
        %3156 = vmatmul.f32.gmra.mxu0 %v3022
        %v3157 = vpop.f32.mrf.mxu0
        %v3158 = vadd.f32 %v3018, %v3157
        %3159 = vdwg.mxu0
        %v3160 = vld [vmem:[%s352] sm:$0xff]
        %v3161 = vld [vmem:[%s352 + $0x8] sm:$0xff]
        %v3162 = vadd.f32 %v3138, %v3160
        %v3163 = vadd.f32 %v3158, %v3161
        %3164 = vst [vmem:[%s338] sm:$0xff] %v3162
        %3165 = vst [vmem:[%s338 + $0x8] sm:$0xff] %v3163
        %s3166 = sand.u32 %s224, 1
        %s3167 = scalar_lea.sflag [#allocation3], %s3166
        %s3168 = sand.u32 %s224, 1
        %s3169 = smul.addr %s3168, 16
        %s3170 = scalar_lea.vmem [#allocation2], %s3169
        // Predicated region
        $region53: #{tpu_custom_call.1} parent=51 // pred_check
          %p3171 = pneg %p234
        $region54: #{tpu_custom_call.1} parent=51 // pred_check_branch
          %3173 = sbr.rel (%p3171) target = $region56
        $region55: #{tpu_custom_call.1} parent=51 // pred_region
          %s3174 = smul.u32 2, %s27
          %3176 = vsyncadd %s3167, 0
          %s3177 = smul.addr %s26, 2
          %s3178 = sadd.s32 %s3174, %s3177
          %s3179 = smul.addr %s3178, 8
          %s3180 = scalar_lea.hbm %s8, %s3179
          %s3182 = sshll.u32 %s3170, 4
          %s3183 = int_to_ptr.vmem [resolvable:$true] %s3182
          %s3184 = sshll.u32 %s3180, 4
          %s3185 = int_to_ptr.hbm [resolvable:$true] %s3184
          %3187 = dma.vmem_to_hbm [thread:$0]  %s3183, 256, %s3185, %s3167
        $region56: #{tpu_custom_call.1} parent=51 // pred_fallthru
          _
      $region52: #{tpu_custom_call.1} parent=5 // pred_fallthru
        _
      %p3188 = scmp.le.s32.totalorder 2, %s17
      // Predicated region
      $region57: #{tpu_custom_call.1} parent=5 // pred_check
        %p3189 = pneg %p3188
      $region58: #{tpu_custom_call.1} parent=5 // pred_check_branch
        %3191 = sbr.rel (%p3189) target = $region60
      $region59: #{tpu_custom_call.1} parent=5 // pred_region
        %s3192 = ssub.s32 %s17, 2
        // Predicated region
        $region61: #{tpu_custom_call.1} parent=59 // pred_check
          %p3193 = pneg %p240
        $region62: #{tpu_custom_call.1} parent=59 // pred_check_branch
          %3195 = sbr.rel (%p3193) target = $region64
        $region63: #{tpu_custom_call.1} parent=59 // pred_region
          %s3196 = sand.u32 %s225, 1
          %s3197 = scalar_lea.sflag [#allocation3], %s3196
          %s3198 = sand.u32 %s225, 1
          %s3199 = smul.addr %s3198, 16
          %s3200 = scalar_lea.vmem [#allocation2], %s3199
          %3202 = dma.done %s3197, 256
        $region64: #{tpu_custom_call.1} parent=59 // pred_fallthru
          _
      $region60: #{tpu_custom_call.1} parent=5 // pred_fallthru
        _
    $region6: #{tpu_custom_call.1} parent=1 // loop_footer
      %s21 = sadd.s32 1, %s17
    $region7: #{tpu_custom_call.1} parent=1 // loop_footer_branch
      %16 = sbr.rel target = $region3
    $region8: #{tpu_custom_call.1} parent=1 // loop_exit
      _
    %3203 = vsyncpa [#allocation3], 1
    %s3204 = scalar_lea.sflag [#allocation3], 1
    %3205 = vsyncpa %s3204, 1

</llo_original>
